<compile_context>
chip_gen: v7x
topology: tpu7x:2x2x1
jax: 0.10.0
libtpu: 0.0.40
codegen_flags: <defaults>
</compile_context>

<pallas_src>
import functools

import jax
import jax.numpy as jnp
from jax.experimental import pallas as pl
from jax.experimental.pallas import tpu as pltpu


# --------------------------------------------------------------------------
# Kernel bodies
# --------------------------------------------------------------------------
def _vi_layer(h, w_mu, w_lv, e_w, b_mu, b_lv, e_b, *, relu, mxu_dtype):
    """One VI layer on VMEM/vreg values.

    The effective weight is formed in f32 (accuracy, per review); only the
    MXU operands are (optionally) cast to `mxu_dtype` (bf16 on v6e/v7x).
    The matmul always accumulates in f32.
    """
    w_eff = w_mu + jnp.exp(0.5 * w_lv) * e_w
    b_eff = b_mu + jnp.exp(0.5 * b_lv) * e_b
    y = jnp.dot(h.astype(mxu_dtype), w_eff.astype(mxu_dtype),
                preferred_element_type=jnp.float32) + b_eff
    return jnp.maximum(y, 0.0) if relu else y


def _fused_kernel_eps(s_ref, x_ref, wpack_ref, hpack_ref, bpack_ref, hbias_ref,
                      ew_ref, ewh_ref, eb_ref, o_ref,
                      *, in_dim, hidden, out_dim, mxu_dtype):
    """Whole forward for one MC sample; intermediates never leave VMEM.

    Packed-operand layout (built once at init):
      wpack : (2, in_dim+hidden, hidden) f32  -> [mu | lv] x [W1 rows ; W2 rows]
      hpack : (nb_heads, 2, hidden, out_dim) f32, head selected by index_map
      bpack : (8, hidden) f32  rows: b1_mu, b1_lv, b2_mu, b2_lv, pad...
      hbias : (nb_heads, 2, 1, out_dim) f32, head selected by index_map
      ew    : (S, in_dim+hidden, hidden) bf16  per-sample weight noise
      ewh   : (S, hidden, out_dim) bf16        per-sample head weight noise
      eb    : (S, 8, hidden) f32  rows: eps_b1, eps_b2, eps_bh(|out_dim), pad...
    """
    x = x_ref[...]
    k2 = in_dim + hidden

    # layer 1
    h = _vi_layer(
        x,
        wpack_ref[0, 0:in_dim, :], wpack_ref[1, 0:in_dim, :],
        ew_ref[0, 0:in_dim, :].astype(jnp.float32),
        bpack_ref[0:1, :], bpack_ref[1:2, :], eb_ref[0, 0:1, :],
        relu=True, mxu_dtype=mxu_dtype)

    # layer 2
    h = _vi_layer(
        h,
        wpack_ref[0, in_dim:k2, :], wpack_ref[1, in_dim:k2, :],
        ew_ref[0, in_dim:k2, :].astype(jnp.float32),
        bpack_ref[2:3, :], bpack_ref[3:4, :], eb_ref[0, 1:2, :],
        relu=True, mxu_dtype=mxu_dtype)

    # head (task-selected by the BlockSpec index_map; leading block dim is 1)
    e_bh = eb_ref[0, 2:3, :][:, 0:out_dim]
    y = _vi_layer(
        h,
        hpack_ref[0, 0], hpack_ref[0, 1],
        ewh_ref[0].astype(jnp.float32),
        hbias_ref[0, 0], hbias_ref[0, 1], e_bh,
        relu=False, mxu_dtype=mxu_dtype)

    o_ref[0] = y.astype(o_ref.dtype)


def _fused_kernel_rng(s_ref, x_ref, wpack_ref, hpack_ref, bpack_ref, hbias_ref,
                      o_ref, *, in_dim, hidden, out_dim, mxu_dtype):
    """Same fused forward, eps drawn on-chip (no weight-sized noise DMA).

    Seeded with seed + sample index so every MC sample gets fresh noise; the
    wrapper should also vary `seed` per training step.
    TODO(synk): the hardware PRNG stream differs from torch.randn_like, so
    this path is checked for determinism/finite-ness, not value equality.
    """
    pltpu.prng_seed(s_ref[1] + pl.program_id(0))
    normal = lambda shape: pltpu.stateful_normal(shape, jnp.float32)
    x = x_ref[...]
    k2 = in_dim + hidden

    h = _vi_layer(x, wpack_ref[0, 0:in_dim, :], wpack_ref[1, 0:in_dim, :],
                  normal((in_dim, hidden)),
                  bpack_ref[0:1, :], bpack_ref[1:2, :], normal((1, hidden)),
                  relu=True, mxu_dtype=mxu_dtype)
    h = _vi_layer(h, wpack_ref[0, in_dim:k2, :], wpack_ref[1, in_dim:k2, :],
                  normal((hidden, hidden)),
                  bpack_ref[2:3, :], bpack_ref[3:4, :], normal((1, hidden)),
                  relu=True, mxu_dtype=mxu_dtype)
    y = _vi_layer(h, hpack_ref[0, 0], hpack_ref[0, 1],
                  normal((hidden, out_dim)),
                  hbias_ref[0, 0], hbias_ref[0, 1], normal((1, out_dim)),
                  relu=False, mxu_dtype=mxu_dtype)
    o_ref[0] = y.astype(o_ref.dtype)


# --------------------------------------------------------------------------
# Packing helpers (run once at init — NOT on the forward path)
# --------------------------------------------------------------------------
def pack_params(p):
    in_dim, hidden = p["mu1_w"].shape
    assert in_dim % 8 == 0, "pad in_dim to a multiple of 8 for the packed slab"
    wpack = jnp.stack(
        [jnp.concatenate([p["mu1_w"], p["mu2_w"]], axis=0),
         jnp.concatenate([p["lv1_w"], p["lv2_w"]], axis=0)], axis=0)  # (2,K12,H)
    bpack = jnp.zeros((8, hidden), jnp.float32)
    bpack = (bpack.at[0].set(p["mu1_b"][0]).at[1].set(p["lv1_b"][0])
                  .at[2].set(p["mu2_b"][0]).at[3].set(p["lv2_b"][0]))
    hpack = jnp.stack([p["muh_w"], p["lvh_w"]], axis=1)   # (heads,2,H,out)
    hbias = jnp.stack([p["muh_b"], p["lvh_b"]], axis=1)   # (heads,2,1,out)
    return {"wpack": wpack, "bpack": bpack, "hpack": hpack, "hbias": hbias}


def pack_eps(eps, in_dim, hidden, out_dim):
    """Per-sample noise, packed. Weight noise is stored bf16 in HBM."""
    S = eps["w1"].shape[0]
    ew = jnp.concatenate([eps["w1"], eps["w2"]], axis=1).astype(jnp.bfloat16)
    ewh = eps["wh"].astype(jnp.bfloat16)
    eb = jnp.zeros((S, 8, hidden), jnp.float32)
    eb = (eb.at[:, 0, :].set(eps["b1"][:, 0, :])
            .at[:, 1, :].set(eps["b2"][:, 0, :])
            .at[:, 2, :out_dim].set(eps["bh"][:, 0, :]))
    return {"ew": ew, "ewh": ewh, "eb": eb}


def unpack_eps_for_ref(ep, in_dim, hidden, out_dim):
    """The exact (bf16-quantized, upcast) eps values the kernel consumes."""
    return {
        "w1": ep["ew"][:, :in_dim, :].astype(jnp.float32),
        "w2": ep["ew"][:, in_dim:, :].astype(jnp.float32),
        "wh": ep["ewh"].astype(jnp.float32),
        "b1": ep["eb"][:, 0:1, :],
        "b2": ep["eb"][:, 1:2, :],
        "bh": ep["eb"][:, 2:3, :out_dim],
    }


# --------------------------------------------------------------------------
# Wrapper
# --------------------------------------------------------------------------
def mlp_vi_forward(x, packed, task_id, *, eps_packed=None, mc_samples=None,
                   seed=0, mxu_dtype=jnp.float32, use_onchip_rng=False):
    """Fused MLP_VI forward over S MC samples.

    x: (B, C, H, W) -> logits (S, B, out_dim). S == 1 with a single eps draw
    reproduces the original torch forward exactly.
    """
    B = x.shape[0]
    h0 = x.reshape(B, -1).astype(jnp.float32)            # x.view(B, -1)
    in_dim = h0.shape[1]
    hidden = packed["wpack"].shape[-1]
    k12 = packed["wpack"].shape[1]
    out_dim = packed["hpack"].shape[-1]
    assert k12 == in_dim + hidden

    scalars = jnp.asarray([task_id, seed], dtype=jnp.int32)

    # Grid-invariant operands: constant block index -> DMA'd once, resident in
    # VMEM across all MC samples (amortizes the parameter stream).
    in_specs = [
        pl.BlockSpec((B, in_dim),             lambda s, sc: (0, 0)),           # x
        pl.BlockSpec((2, k12, hidden),        lambda s, sc: (0, 0, 0)),        # wpack
        pl.BlockSpec((1, 2, hidden, out_dim), lambda s, sc: (sc[0], 0, 0, 0)), # hpack
        pl.BlockSpec((8, hidden),             lambda s, sc: (0, 0)),           # bpack
        pl.BlockSpec((1, 2, 1, out_dim),      lambda s, sc: (sc[0], 0, 0, 0)), # hbias
    ]
    inputs = [h0, packed["wpack"], packed["hpack"], packed["bpack"], packed["hbias"]]

    if use_onchip_rng:
        assert mc_samples is not None
        S = int(mc_samples)
        kern = functools.partial(_fused_kernel_rng, in_dim=in_dim, hidden=hidden,
                                 out_dim=out_dim, mxu_dtype=mxu_dtype)
    else:
        assert eps_packed is not None
        S = eps_packed["ew"].shape[0]
        kern = functools.partial(_fused_kernel_eps, in_dim=in_dim, hidden=hidden,
                                 out_dim=out_dim, mxu_dtype=mxu_dtype)
        # Per-sample noise blocks, selected by the sample grid index.
        in_specs += [
            pl.BlockSpec((1, k12, hidden),    lambda s, sc: (s, 0, 0)),        # ew (bf16)
            pl.BlockSpec((1, hidden, out_dim), lambda s, sc: (s, 0, 0)),       # ewh (bf16)
            pl.BlockSpec((1, 8, hidden),      lambda s, sc: (s, 0, 0)),        # eb
        ]
        inputs += [eps_packed["ew"], eps_packed["ewh"], eps_packed["eb"]]

    out = pl.pallas_call(
        kern,
        out_shape=jax.ShapeDtypeStruct((S, B, out_dim), jnp.float32),
        grid_spec=pltpu.PrefetchScalarGridSpec(
            num_scalar_prefetch=1,               # [task_id, seed] lands in SMEM
            grid=(S,),                           # MC-sample axis
            in_specs=in_specs,
            out_specs=pl.BlockSpec((1, B, out_dim), lambda s, sc: (s, 0, 0)),
        ),
        # Samples are independent -> shardable across v7x's two TensorCores;
        # a plain sequential loop on v5e/v6e. All operands total < 1 MiB, far
        # under the default scoped VMEM limit; add a K-grid + vmem_limit_bytes
        # only if in_dim/hidden grow past a few MiB per layer (v7x: 64 MiB phys).
        compiler_params=pltpu.CompilerParams(dimension_semantics=("parallel",)),
    )(scalars, *inputs)
    return out


# --------------------------------------------------------------------------
# Pure-JAX reference (exact semantics of the PyTorch forward, per sample)
# --------------------------------------------------------------------------
def _ref_layer(h, w_mu, b_mu, w_lv, b_lv, e_w, e_b, relu_):
    w_eff = w_mu + jnp.exp(0.5 * w_lv) * e_w
    b_eff = b_mu + jnp.exp(0.5 * b_lv) * e_b
    y = h @ w_eff + b_eff
    return jnp.maximum(y, 0.0) if relu_ else y


def mlp_vi_forward_ref(x, p, eps, task_id):
    B = x.shape[0]
    h0 = x.reshape(B, -1).astype(jnp.float32)
    outs = []
    for s in range(eps["w1"].shape[0]):
        h = _ref_layer(h0, p["mu1_w"], p["mu1_b"], p["lv1_w"], p["lv1_b"],
                       eps["w1"][s], eps["b1"][s], True)
        h = _ref_layer(h, p["mu2_w"], p["mu2_b"], p["lv2_w"], p["lv2_b"],
                       eps["w2"][s], eps["b2"][s], True)
        y = _ref_layer(h, p["muh_w"][task_id], p["muh_b"][task_id],
                       p["lvh_w"][task_id], p["lvh_b"][task_id],
                       eps["wh"][s], eps["bh"][s], False)
        outs.append(y)
    return jnp.stack(outs, axis=0)


# --------------------------------------------------------------------------
if __name__ == "__main__":
    # Split-MNIST-style shapes: flattened image -> 2-layer MLP -> per-task head.
    B, C, Himg, Wimg = 8, 1, 16, 16
    in_dim = C * Himg * Wimg            # 256
    hidden = 128
    out_dim = 2
    nb_heads = 2
    task_id = 1                         # exercises in-kernel head selection
    S = 4                               # MC samples fused into one kernel call
    sigma_0 = -6.0                      # initialize_weights_biases(sigma_0=-6)

    key = jax.random.PRNGKey(0)
    ks = jax.random.split(key, 12)

    params = {
        "mu1_w": 0.1 * jax.random.normal(ks[0], (in_dim, hidden), jnp.float32),
        "mu1_b": 0.1 * jax.random.normal(ks[1], (1, hidden), jnp.float32),
        "mu2_w": 0.1 * jax.random.normal(ks[2], (hidden, hidden), jnp.float32),
        "mu2_b": 0.1 * jax.random.normal(ks[3], (1, hidden), jnp.float32),
        "muh_w": 0.1 * jax.random.normal(ks[4], (nb_heads, hidden, out_dim), jnp.float32),
        "muh_b": 0.1 * jax.random.normal(ks[5], (nb_heads, 1, out_dim), jnp.float32),
        "lv1_w": jnp.full((in_dim, hidden), sigma_0, jnp.float32),
        "lv1_b": jnp.full((1, hidden), sigma_0, jnp.float32),
        "lv2_w": jnp.full((hidden, hidden), sigma_0, jnp.float32),
        "lv2_b": jnp.full((1, hidden), sigma_0, jnp.float32),
        "lvh_w": jnp.full((nb_heads, hidden, out_dim), sigma_0, jnp.float32),
        "lvh_b": jnp.full((nb_heads, 1, out_dim), sigma_0, jnp.float32),
    }
    packed = pack_params(params)        # built once, off the hot path

    # torch.randn_like noise, one independent draw per MC sample, fixed key.
    eps = {
        "w1": jax.random.normal(ks[6], (S, in_dim, hidden), jnp.float32),
        "w2": jax.random.normal(ks[7], (S, hidden, hidden), jnp.float32),
        "wh": jax.random.normal(ks[8], (S, hidden, out_dim), jnp.float32),
        "b1": jax.random.normal(ks[9], (S, 1, hidden), jnp.float32),
        "b2": jax.random.normal(ks[10], (S, 1, hidden), jnp.float32),
        "bh": jax.random.normal(ks[11], (S, 1, out_dim), jnp.float32),
    }
    eps_packed = pack_eps(eps, in_dim, hidden, out_dim)
    # The reference consumes exactly the eps values the kernel sees
    # (weight-noise stored bf16 in HBM, upcast to f32 on both sides).
    eps_used = unpack_eps_for_ref(eps_packed, in_dim, hidden, out_dim)

    x = jax.random.normal(jax.random.PRNGKey(42), (B, C, Himg, Wimg), jnp.float32)

    # ---- 1) Verified contract: f32 math, external eps, S fused MC samples ----
    out = jax.block_until_ready(
        mlp_vi_forward(x, packed, task_id, eps_packed=eps_packed))
    ref = mlp_vi_forward_ref(x, params, eps_used, task_id)
    assert out.shape == (S, B, out_dim)
    assert jnp.allclose(out, ref, atol=1e-4, rtol=1e-4), "Pallas output mismatch"

    # S == 1 is exactly the original torch forward (single eps draw per call).
    eps1 = {k: v[:1] for k, v in eps_packed.items()}
    out1 = jax.block_until_ready(
        mlp_vi_forward(x, packed, task_id, eps_packed=eps1))
    assert jnp.allclose(out1[0], ref[0], atol=1e-4, rtol=1e-4), "S=1 mismatch"

    # ---- 2) bf16 MXU operands (effective-weight add stays in f32) ----
    out_bf16 = jax.block_until_ready(
        mlp_vi_forward(x, packed, task_id, eps_packed=eps_packed,
                       mxu_dtype=jnp.bfloat16))
    assert jnp.allclose(out_bf16, ref, atol=0.25, rtol=0.05), "bf16 MXU path too far off"

    # ---- 3) Optional: on-chip hardware-PRNG eps (no weight-noise DMA).
    #         Skipped gracefully if the local JAX / TPU generation lacks the
    #         stateful PRNG helpers (and left non-default on v5e per review).
    def _optional(fn):
        try:
            return jax.block_until_ready(fn())
        except Exception:
            return None

    out_rng = _optional(lambda: mlp_vi_forward(
        x, packed, task_id, use_onchip_rng=True, mc_samples=S, seed=123))
    if out_rng is not None:
        out_rng2 = _optional(lambda: mlp_vi_forward(
            x, packed, task_id, use_onchip_rng=True, mc_samples=S, seed=123))
        assert out_rng.shape == (S, B, out_dim)
        assert bool(jnp.all(jnp.isfinite(out_rng)))
        if out_rng2 is not None:
            assert jnp.allclose(out_rng, out_rng2), "on-chip PRNG not deterministic"

    print("KERNEL_OK")
</pallas_src>

<mosaic_0001>
module attributes {stable_mosaic.version = 11 : i64} {
  func.func @_fused_kernel_eps(%arg0: i32, %arg1: memref<2xi32, #tpu.memory_space<smem>>, %arg2: memref<8x256xf32, #tpu.memory_space<vmem>>, %arg3: memref<2x384x128xf32, #tpu.memory_space<vmem>>, %arg4: memref<1x2x128x2xf32, #tpu.memory_space<vmem>>, %arg5: memref<8x128xf32, #tpu.memory_space<vmem>>, %arg6: memref<1x2x1x2xf32, #tpu.memory_space<vmem>>, %arg7: memref<1x384x128xbf16, #tpu.memory_space<vmem>>, %arg8: memref<1x128x2xbf16, #tpu.memory_space<vmem>>, %arg9: memref<1x8x128xf32, #tpu.memory_space<vmem>>, %arg10: memref<1x8x2xf32, #tpu.memory_space<vmem>>) attributes {dimension_semantics = [#tpu.dimension_semantics<parallel>], iteration_bounds = array<i64: 4>, scalar_prefetch = 1 : i64, scratch_operands = 0 : i64, tpu.core_type = #tpu.core_type<tc>, window_params = [{pipeline_mode = #tpu.pipeline_mode<synchronous>, transform_indices = @transform_0, window_bounds = array<i64: 8, 256>}, {pipeline_mode = #tpu.pipeline_mode<synchronous>, transform_indices = @transform_1, window_bounds = array<i64: 2, 384, 128>}, {transform_indices = @transform_2, window_bounds = array<i64: 1, 2, 128, 2>}, {pipeline_mode = #tpu.pipeline_mode<synchronous>, transform_indices = @transform_3, window_bounds = array<i64: 8, 128>}, {transform_indices = @transform_4, window_bounds = array<i64: 1, 2, 1, 2>}, {transform_indices = @transform_5, window_bounds = array<i64: 1, 384, 128>}, {transform_indices = @transform_6, window_bounds = array<i64: 1, 128, 2>}, {transform_indices = @transform_7, window_bounds = array<i64: 1, 8, 128>}, {transform_indices = @transform_8, window_bounds = array<i64: 1, 8, 2>}]} {
    %c0 = arith.constant 0 : index
    %c0_0 = arith.constant 0 : index
    %0 = vector.load %arg2[%c0, %c0_0] : memref<8x256xf32, #tpu.memory_space<vmem>>, vector<8x256xf32>
    %c0_1 = arith.constant 0 : index
    %c0_2 = arith.constant 0 : index
    %c0_3 = arith.constant 0 : index
    %1 = vector.load %arg3[%c0_1, %c0_2, %c0_3] : memref<2x384x128xf32, #tpu.memory_space<vmem>>, vector<1x256x128xf32>
    %2 = vector.shape_cast %1 : vector<1x256x128xf32> to vector<256x128xf32>
    %c1 = arith.constant 1 : index
    %c0_4 = arith.constant 0 : index
    %c0_5 = arith.constant 0 : index
    %3 = vector.load %arg3[%c1, %c0_4, %c0_5] : memref<2x384x128xf32, #tpu.memory_space<vmem>>, vector<1x256x128xf32>
    %4 = vector.shape_cast %3 : vector<1x256x128xf32> to vector<256x128xf32>
    %c0_6 = arith.constant 0 : index
    %c0_7 = arith.constant 0 : index
    %c0_8 = arith.constant 0 : index
    %5 = vector.load %arg7[%c0_6, %c0_7, %c0_8] : memref<1x384x128xbf16, #tpu.memory_space<vmem>>, vector<1x256x128xbf16>
    %6 = vector.shape_cast %5 : vector<1x256x128xbf16> to vector<256x128xbf16>
    %7 = arith.extf %6 : vector<256x128xbf16> to vector<256x128xf32>
    %c0_9 = arith.constant 0 : index
    %c0_10 = arith.constant 0 : index
    %8 = vector.load %arg5[%c0_9, %c0_10] : memref<8x128xf32, #tpu.memory_space<vmem>>, vector<1x128xf32>
    %c1_11 = arith.constant 1 : index
    %c0_12 = arith.constant 0 : index
    %9 = vector.load %arg5[%c1_11, %c0_12] : memref<8x128xf32, #tpu.memory_space<vmem>>, vector<1x128xf32>
    %c0_13 = arith.constant 0 : index
    %c0_14 = arith.constant 0 : index
    %c0_15 = arith.constant 0 : index
    %10 = vector.load %arg9[%c0_13, %c0_14, %c0_15] : memref<1x8x128xf32, #tpu.memory_space<vmem>>, vector<1x1x128xf32>
    %11 = vector.shape_cast %10 : vector<1x1x128xf32> to vector<1x128xf32>
    %cst = arith.constant 5.000000e-01 : f32
    %12 = vector.broadcast %cst : f32 to vector<256x128xf32>
    %13 = arith.mulf %12, %4 : vector<256x128xf32>
    %14 = math.exp %13 : vector<256x128xf32>
    %15 = arith.mulf %14, %7 : vector<256x128xf32>
    %16 = arith.addf %2, %15 : vector<256x128xf32>
    %cst_16 = arith.constant 5.000000e-01 : f32
    %17 = vector.broadcast %cst_16 : f32 to vector<1x128xf32>
    %18 = arith.mulf %17, %9 : vector<1x128xf32>
    %19 = math.exp %18 : vector<1x128xf32>
    %20 = arith.mulf %19, %11 : vector<1x128xf32>
    %21 = arith.addf %8, %20 : vector<1x128xf32>
    %cst_17 = arith.constant dense<0.000000e+00> : vector<8x128xf32>
    %22 = tpu.matmul %0, %16, %cst_17 {dimension_numbers = #tpu.dot_dimension_numbers<[1], [0], [0], [1], [0, 0, 1, 1], [], []>} : vector<8x256xf32>, vector<256x128xf32>, vector<8x128xf32> -> vector<8x128xf32>
    %23 = vector.broadcast %21 : vector<1x128xf32> to vector<8x128xf32>
    %24 = arith.addf %22, %23 : vector<8x128xf32>
    %cst_18 = arith.constant 0.000000e+00 : f32
    %25 = vector.broadcast %cst_18 : f32 to vector<8x128xf32>
    %26 = arith.maximumf %24, %25 : vector<8x128xf32>
    %c0_19 = arith.constant 0 : index
    %c256 = arith.constant 256 : index
    %c0_20 = arith.constant 0 : index
    %27 = vector.load %arg3[%c0_19, %c256, %c0_20] : memref<2x384x128xf32, #tpu.memory_space<vmem>>, vector<1x128x128xf32>
    %28 = vector.shape_cast %27 : vector<1x128x128xf32> to vector<128x128xf32>
    %c1_21 = arith.constant 1 : index
    %c256_22 = arith.constant 256 : index
    %c0_23 = arith.constant 0 : index
    %29 = vector.load %arg3[%c1_21, %c256_22, %c0_23] : memref<2x384x128xf32, #tpu.memory_space<vmem>>, vector<1x128x128xf32>
    %30 = vector.shape_cast %29 : vector<1x128x128xf32> to vector<128x128xf32>
    %c0_24 = arith.constant 0 : index
    %c256_25 = arith.constant 256 : index
    %c0_26 = arith.constant 0 : index
    %31 = vector.load %arg7[%c0_24, %c256_25, %c0_26] : memref<1x384x128xbf16, #tpu.memory_space<vmem>>, vector<1x128x128xbf16>
    %32 = vector.shape_cast %31 : vector<1x128x128xbf16> to vector<128x128xbf16>
    %33 = arith.extf %32 : vector<128x128xbf16> to vector<128x128xf32>
    %c2 = arith.constant 2 : index
    %c0_27 = arith.constant 0 : index
    %34 = vector.load %arg5[%c2, %c0_27] : memref<8x128xf32, #tpu.memory_space<vmem>>, vector<1x128xf32>
    %c3 = arith.constant 3 : index
    %c0_28 = arith.constant 0 : index
    %35 = vector.load %arg5[%c3, %c0_28] : memref<8x128xf32, #tpu.memory_space<vmem>>, vector<1x128xf32>
    %c0_29 = arith.constant 0 : index
    %c1_30 = arith.constant 1 : index
    %c0_31 = arith.constant 0 : index
    %36 = vector.load %arg9[%c0_29, %c1_30, %c0_31] : memref<1x8x128xf32, #tpu.memory_space<vmem>>, vector<1x1x128xf32>
    %37 = vector.shape_cast %36 : vector<1x1x128xf32> to vector<1x128xf32>
    %cst_32 = arith.constant 5.000000e-01 : f32
    %38 = vector.broadcast %cst_32 : f32 to vector<128x128xf32>
    %39 = arith.mulf %38, %30 : vector<128x128xf32>
    %40 = math.exp %39 : vector<128x128xf32>
    %41 = arith.mulf %40, %33 : vector<128x128xf32>
    %42 = arith.addf %28, %41 : vector<128x128xf32>
    %cst_33 = arith.constant 5.000000e-01 : f32
    %43 = vector.broadcast %cst_33 : f32 to vector<1x128xf32>
    %44 = arith.mulf %43, %35 : vector<1x128xf32>
    %45 = math.exp %44 : vector<1x128xf32>
    %46 = arith.mulf %45, %37 : vector<1x128xf32>
    %47 = arith.addf %34, %46 : vector<1x128xf32>
    %cst_34 = arith.constant dense<0.000000e+00> : vector<8x128xf32>
    %48 = tpu.matmul %26, %42, %cst_34 {dimension_numbers = #tpu.dot_dimension_numbers<[1], [0], [0], [1], [0, 0, 1, 1], [], []>} : vector<8x128xf32>, vector<128x128xf32>, vector<8x128xf32> -> vector<8x128xf32>
    %49 = vector.broadcast %47 : vector<1x128xf32> to vector<8x128xf32>
    %50 = arith.addf %48, %49 : vector<8x128xf32>
    %cst_35 = arith.constant 0.000000e+00 : f32
    %51 = vector.broadcast %cst_35 : f32 to vector<8x128xf32>
    %52 = arith.maximumf %50, %51 : vector<8x128xf32>
    %c0_36 = arith.constant 0 : index
    %c2_37 = arith.constant 2 : index
    %c0_38 = arith.constant 0 : index
    %53 = vector.load %arg9[%c0_36, %c2_37, %c0_38] : memref<1x8x128xf32, #tpu.memory_space<vmem>>, vector<1x1x128xf32>
    %54 = vector.shape_cast %53 : vector<1x1x128xf32> to vector<1x128xf32>
    %55 = vector.extract_strided_slice %54 {offsets = [0, 0], sizes = [1, 2], strides = [1, 1]} : vector<1x128xf32> to vector<1x2xf32>
    %c0_39 = arith.constant 0 : index
    %c0_40 = arith.constant 0 : index
    %c0_41 = arith.constant 0 : index
    %c0_42 = arith.constant 0 : index
    %56 = vector.load %arg4[%c0_39, %c0_40, %c0_41, %c0_42] : memref<1x2x128x2xf32, #tpu.memory_space<vmem>>, vector<1x1x128x2xf32>
    %57 = vector.shape_cast %56 : vector<1x1x128x2xf32> to vector<128x2xf32>
    %c0_43 = arith.constant 0 : index
    %c1_44 = arith.constant 1 : index
    %c0_45 = arith.constant 0 : index
    %c0_46 = arith.constant 0 : index
    %58 = vector.load %arg4[%c0_43, %c1_44, %c0_45, %c0_46] : memref<1x2x128x2xf32, #tpu.memory_space<vmem>>, vector<1x1x128x2xf32>
    %59 = vector.shape_cast %58 : vector<1x1x128x2xf32> to vector<128x2xf32>
    %c0_47 = arith.constant 0 : index
    %c0_48 = arith.constant 0 : index
    %c0_49 = arith.constant 0 : index
    %60 = vector.load %arg8[%c0_47, %c0_48, %c0_49] : memref<1x128x2xbf16, #tpu.memory_space<vmem>>, vector<1x128x2xbf16>
    %61 = vector.shape_cast %60 : vector<1x128x2xbf16> to vector<128x2xbf16>
    %62 = arith.extf %61 : vector<128x2xbf16> to vector<128x2xf32>
    %c0_50 = arith.constant 0 : index
    %c0_51 = arith.constant 0 : index
    %c0_52 = arith.constant 0 : index
    %c0_53 = arith.constant 0 : index
    %63 = vector.load %arg6[%c0_50, %c0_51, %c0_52, %c0_53] : memref<1x2x1x2xf32, #tpu.memory_space<vmem>>, vector<1x1x1x2xf32>
    %64 = vector.shape_cast %63 : vector<1x1x1x2xf32> to vector<1x2xf32>
    %c0_54 = arith.constant 0 : index
    %c1_55 = arith.constant 1 : index
    %c0_56 = arith.constant 0 : index
    %c0_57 = arith.constant 0 : index
    %65 = vector.load %arg6[%c0_54, %c1_55, %c0_56, %c0_57] : memref<1x2x1x2xf32, #tpu.memory_space<vmem>>, vector<1x1x1x2xf32>
    %66 = vector.shape_cast %65 : vector<1x1x1x2xf32> to vector<1x2xf32>
    %cst_58 = arith.constant 5.000000e-01 : f32
    %67 = vector.broadcast %cst_58 : f32 to vector<128x2xf32>
    %68 = arith.mulf %67, %59 : vector<128x2xf32>
    %69 = math.exp %68 : vector<128x2xf32>
    %70 = arith.mulf %69, %62 : vector<128x2xf32>
    %71 = arith.addf %57, %70 : vector<128x2xf32>
    %cst_59 = arith.constant 5.000000e-01 : f32
    %72 = vector.broadcast %cst_59 : f32 to vector<1x2xf32>
    %73 = arith.mulf %72, %66 : vector<1x2xf32>
    %74 = math.exp %73 : vector<1x2xf32>
    %75 = arith.mulf %74, %55 : vector<1x2xf32>
    %76 = arith.addf %64, %75 : vector<1x2xf32>
    %cst_60 = arith.constant dense<0.000000e+00> : vector<8x2xf32>
    %77 = tpu.matmul %52, %71, %cst_60 {dimension_numbers = #tpu.dot_dimension_numbers<[1], [0], [0], [1], [0, 0, 1, 1], [], []>} : vector<8x128xf32>, vector<128x2xf32>, vector<8x2xf32> -> vector<8x2xf32>
    %78 = vector.broadcast %76 : vector<1x2xf32> to vector<8x2xf32>
    %79 = arith.addf %77, %78 : vector<8x2xf32>
    %c0_61 = arith.constant 0 : index
    %c0_62 = arith.constant 0 : index
    %c0_63 = arith.constant 0 : index
    %80 = vector.load %arg10[%c0_61, %c0_62, %c0_63] : memref<1x8x2xf32, #tpu.memory_space<vmem>>, vector<1x8x2xf32>
    %81 = vector.shape_cast %80 : vector<1x8x2xf32> to vector<8x2xf32>
    %82 = vector.shape_cast %79 : vector<8x2xf32> to vector<1x8x2xf32>
    tpu.vector_store %arg10[%c0_61, %c0_62, %c0_63], %82 {strides = array<i32>} : memref<1x8x2xf32, #tpu.memory_space<vmem>>, vector<1x8x2xf32>,
    return
  }
  func.func @transform_0(%arg0: i32, %arg1: memref<2xi32, #tpu.memory_space<smem>>) -> (i32, i32) {
    %c0_i32 = arith.constant 0 : i32
    %c0_i32_0 = arith.constant 0 : i32
    %c0_i32_1 = arith.constant 0 : i32
    return %c0_i32, %c0_i32_0 : i32, i32
  }
  func.func @transform_1(%arg0: i32, %arg1: memref<2xi32, #tpu.memory_space<smem>>) -> (i32, i32, i32) {
    %c0_i32 = arith.constant 0 : i32
    %c0_i32_0 = arith.constant 0 : i32
    %c0_i32_1 = arith.constant 0 : i32
    %c0_i32_2 = arith.constant 0 : i32
    return %c0_i32, %c0_i32_0, %c0_i32_1 : i32, i32, i32
  }
  func.func @transform_2(%arg0: i32, %arg1: memref<2xi32, #tpu.memory_space<smem>>) -> (i32, i32, i32, i32) {
    %c0 = arith.constant 0 : index
    %0 = memref.load %arg1[%c0] : memref<2xi32, #tpu.memory_space<smem>>
    %c0_i32 = arith.constant 0 : i32
    %c0_i32_0 = arith.constant 0 : i32
    %c0_i32_1 = arith.constant 0 : i32
    %c0_i32_2 = arith.constant 0 : i32
    return %0, %c0_i32, %c0_i32_0, %c0_i32_1 : i32, i32, i32, i32
  }
  func.func @transform_3(%arg0: i32, %arg1: memref<2xi32, #tpu.memory_space<smem>>) -> (i32, i32) {
    %c0_i32 = arith.constant 0 : i32
    %c0_i32_0 = arith.constant 0 : i32
    %c0_i32_1 = arith.constant 0 : i32
    return %c0_i32, %c0_i32_0 : i32, i32
  }
  func.func @transform_4(%arg0: i32, %arg1: memref<2xi32, #tpu.memory_space<smem>>) -> (i32, i32, i32, i32) {
    %c0 = arith.constant 0 : index
    %0 = memref.load %arg1[%c0] : memref<2xi32, #tpu.memory_space<smem>>
    %c0_i32 = arith.constant 0 : i32
    %c0_i32_0 = arith.constant 0 : i32
    %c0_i32_1 = arith.constant 0 : i32
    %c0_i32_2 = arith.constant 0 : i32
    return %0, %c0_i32, %c0_i32_0, %c0_i32_1 : i32, i32, i32, i32
  }
  func.func @transform_5(%arg0: i32, %arg1: memref<2xi32, #tpu.memory_space<smem>>) -> (i32, i32, i32) {
    %c0_i32 = arith.constant 0 : i32
    %c0_i32_0 = arith.constant 0 : i32
    %c0_i32_1 = arith.constant 0 : i32
    return %arg0, %c0_i32, %c0_i32_0 : i32, i32, i32
  }
  func.func @transform_6(%arg0: i32, %arg1: memref<2xi32, #tpu.memory_space<smem>>) -> (i32, i32, i32) {
    %c0_i32 = arith.constant 0 : i32
    %c0_i32_0 = arith.constant 0 : i32
    %c0_i32_1 = arith.constant 0 : i32
    return %arg0, %c0_i32, %c0_i32_0 : i32, i32, i32
  }
  func.func @transform_7(%arg0: i32, %arg1: memref<2xi32, #tpu.memory_space<smem>>) -> (i32, i32, i32) {
    %c0_i32 = arith.constant 0 : i32
    %c0_i32_0 = arith.constant 0 : i32
    %c0_i32_1 = arith.constant 0 : i32
    return %arg0, %c0_i32, %c0_i32_0 : i32, i32, i32
  }
  func.func @transform_8(%arg0: i32, %arg1: memref<2xi32, #tpu.memory_space<smem>>) -> (i32, i32, i32) {
    %c0_i32 = arith.constant 0 : i32
    %c0_i32_0 = arith.constant 0 : i32
    %c0_i32_1 = arith.constant 0 : i32
    return %arg0, %c0_i32, %c0_i32_0 : i32, i32, i32
  }
}

</mosaic_0001>

<llo_original>
// kernel: tpu_custom_call.1
$region0: #{tpu_custom_call.1}
  #allocation0 [shape = 'u32[]', space=smem, size = 0x4, offset = 0x4, fixed_abs, tag = 'smem constant byte address 0x4 - core index']
  #allocation1 [shape = 'u32[144,128]{1,0:T(1,128)}', space=vmem, size = 0x12000, scoped, tag = 'internal scratch']
  #allocation2 [shape = 's32[1]{0}', space=sflag, size = 0x4, scoped, tag = 'scoped memory for tpu_custom_call.1']
  #allocation3 [shape = 'u8[512]{0}', space=smem, size = 0x200, scoped, tag = 'prefetched SMEM operand 0']
  %s0 = inlined_call_operand.vmem [shape: s32[2], index: 0, kind: input, shape index: {}]
  %s1 = inlined_call_operand.hbm [shape: f32[8,256], index: 1, kind: input, shape index: {}]
  %s2 = inlined_call_operand.vmem [shape: f32[2,384,128], index: 2, kind: input, shape index: {}]
  %s3 = inlined_call_operand.vmem [shape: f32[2,2,128,2], index: 3, kind: input, shape index: {}]
  %s4 = inlined_call_operand.hbm [shape: f32[8,128], index: 4, kind: input, shape index: {}]
  %s5 = inlined_call_operand.hbm [shape: f32[2,2,1,2], index: 5, kind: input, shape index: {}]
  %s6 = inlined_call_operand.hbm [shape: bf16[4,384,128], index: 6, kind: input, shape index: {}]
  %s7 = inlined_call_operand.vmem [shape: bf16[4,128,2], index: 7, kind: input, shape index: {}]
  %s8 = inlined_call_operand.vmem [shape: f32[4,8,128], index: 8, kind: input, shape index: {}]
  %s9 = inlined_call_operand.vmem [shape: f32[4,8,2], index: 9, kind: output, shape index: {}]
  %s10 = sld [smem:[#allocation0]]
  $region81: #{tpu_custom_call.1} parent=0
    _
  %s12 = ssub.s32 1, %s10
  %s13 = scalar_select 0, %s12, %s10
  %s14 = sshll.u32 %s0, 4
  %s15 = int_to_ptr.vmem [resolvable:$true] %s14
  %17 = dma.vmem_to_smem %s15, 16, [#allocation3], [#allocation2]
  %18 = dma.done [#allocation2], 16
  %19 = sfence
  $region1: #{tpu_custom_call.1} parent=0
    #allocation4 [shape = 'u8[8192]{0}', space=vmem, size = 0x2000, scoped, tag = 'input window, operand 1, single buffered']
    #allocation5 [shape = 's32[2]{0}', space=sflag, size = 0x8, scoped, tag = 'scoped memory for tpu_custom_call.1']
    #allocation6 [shape = 'u8[4096]{0}', space=vmem, size = 0x1000, scoped, tag = 'input window, operand 4, single buffered']
    #allocation7 [shape = 's32[1]{0}', space=sflag, size = 0x4, scoped, tag = 'scoped memory for tpu_custom_call.1']
    #allocation8 [shape = 'u8[1024]{0}', space=vmem, size = 0x400, scoped, tag = 'input window, operand 5, single buffered']
    #allocation9 [shape = 'u8[196608]{0}', space=vmem, size = 0x30000, scoped, tag = 'input window, operand 6']
    #allocation10 [shape = 's32[2]{0}', space=sflag, size = 0x8, scoped, tag = 'scoped memory for tpu_custom_call.1']
    %20 = vsyncpa [#allocation5], 0
    %21 = vsyncpa [#allocation7], 0
    %22 = vsyncpa [#allocation10], 0
    %s23 = scalar_lea.sflag [#allocation10], 1
    %24 = vsyncpa %s23, 0
    loop: start=0, step=1, limit=6
    $region2: #{tpu_custom_call.1} parent=1 // loop_pre_header
      _
    $region3: #{tpu_custom_call.1} parent=1 // loop_header
      %s26 = sphi 0, %s30
      %p27 = scmp.ge.s32.totalorder %s26, 6
      %s34 = sphi 0, %s34
      %s36 = sphi 0, %s34
      %s37 = sphi 0, %s36
      %s51 = sphi 0, %s37
      %s55 = sphi 0, %s55
      %s57 = sphi 0, %s55
      %s58 = sphi 0, %s57
      %s72 = sphi 0, %s58
      %s80 = sphi 0, %s82
      %s83 = sphi 0, %s80
      %s84 = sphi 0, %s83
      %s100 = sphi 0, %s84
      %s104 = sphi 0, %s104
      %s106 = sphi 0, %s104
      %s107 = sphi 0, %s106
      %s121 = sphi 0, %s107
      %s129 = sphi 0, %s131
      %s132 = sphi 0, %s129
      %s133 = sphi 0, %s132
      %s149 = sphi 0, %s133
      %s155 = sphi 0, %s157
      %s158 = sphi 0, %s155
      %s159 = sphi 0, %s158
      %s175 = sphi 0, %s159
      %s181 = sphi 0, %s183
      %s184 = sphi 0, %s181
      %s185 = sphi 0, %s184
      %s201 = sphi 0, %s185
      %s207 = sphi 0, %s209
      %s210 = sphi 0, %s207
      %s211 = sphi 0, %s210
      %s227 = sphi 0, %s211
      %s233 = sphi 0, %s235
      %s236 = sphi 0, %s233
      %s237 = sphi 0, %s236
      %s253 = sphi 0, %s237
    $region4: #{tpu_custom_call.1} parent=1 // loop_header_branch
      %29 = sbr.rel (%p27) target = $region8
    $region5: #{tpu_custom_call.1} parent=1 // loop_body
      %s31 = ssub.s32 %s26, 1
      %s32 = ssub.s32 %s26, 2
      %s33 = sadd.s32 %s26, 1
      %s35 = sadd.s32 %s34, 1
      %p38 = scmp.eq.s32.totalorder %s26, 3
      %p39 = scmp.ne.s32.totalorder %s34, %s36
      %p40 = scmp.eq.s32.totalorder %s26, 0
      %p41 = por %p39, %p40
      %p42 = scmp.ne.s32.totalorder %s34, %s36
      %p43 = scmp.eq.s32.totalorder %s31, 3
      %p44 = por %p42, %p43
      %p45 = scmp.ne.s32.totalorder %s36, %s37
      %p46 = scmp.eq.s32.totalorder %s31, 0
      %p47 = por %p45, %p46
      %p48 = scmp.ne.s32.totalorder %s36, %s37
      %p49 = scmp.eq.s32.totalorder %s32, 3
      %p50 = por %p48, %p49
      %p52 = scmp.ne.s32.totalorder %s37, %s51
      %p53 = scmp.eq.s32.totalorder %s32, 0
      %p54 = por %p52, %p53
      %s56 = sadd.s32 %s55, 1
      %p59 = scmp.eq.s32.totalorder %s26, 3
      %p60 = scmp.ne.s32.totalorder %s55, %s57
      %p61 = scmp.eq.s32.totalorder %s26, 0
      %p62 = por %p60, %p61
      %p63 = scmp.ne.s32.totalorder %s55, %s57
      %p64 = scmp.eq.s32.totalorder %s31, 3
      %p65 = por %p63, %p64
      %p66 = scmp.ne.s32.totalorder %s57, %s58
      %p67 = scmp.eq.s32.totalorder %s31, 0
      %p68 = por %p66, %p67
      %p69 = scmp.ne.s32.totalorder %s57, %s58
      %p70 = scmp.eq.s32.totalorder %s32, 3
      %p71 = por %p69, %p70
      %p73 = scmp.ne.s32.totalorder %s58, %s72
      %p74 = scmp.eq.s32.totalorder %s32, 0
      %p75 = por %p73, %p74
      %s76 = sld [smem:[#allocation3]]
      %s77 = sld [smem:[#allocation3]]
      %s78 = ssub.s32 %s76, %s77
      %p79 = scmp.eq.s32.totalorder %s78, 0
      %s81 = sadd.s32 %s80, 1
      %s82 = scalar_select %p79, %s80, %s81
      %p85 = pneg %p79
      %p86 = scmp.eq.s32.totalorder %s26, 3
      %p87 = por %p85, %p86
      %p88 = scmp.ne.s32.totalorder %s80, %s83
      %p89 = scmp.eq.s32.totalorder %s26, 0
      %p90 = por %p88, %p89
      %p91 = scmp.ne.s32.totalorder %s80, %s83
      %p92 = scmp.eq.s32.totalorder %s31, 3
      %p93 = por %p91, %p92
      %p94 = scmp.ne.s32.totalorder %s83, %s84
      %p95 = scmp.eq.s32.totalorder %s31, 0
      %p96 = por %p94, %p95
      %p97 = scmp.ne.s32.totalorder %s83, %s84
      %p98 = scmp.eq.s32.totalorder %s32, 3
      %p99 = por %p97, %p98
      %p101 = scmp.ne.s32.totalorder %s84, %s100
      %p102 = scmp.eq.s32.totalorder %s32, 0
      %p103 = por %p101, %p102
      %s105 = sadd.s32 %s104, 1
      %p108 = scmp.eq.s32.totalorder %s26, 3
      %p109 = scmp.ne.s32.totalorder %s104, %s106
      %p110 = scmp.eq.s32.totalorder %s26, 0
      %p111 = por %p109, %p110
      %p112 = scmp.ne.s32.totalorder %s104, %s106
      %p113 = scmp.eq.s32.totalorder %s31, 3
      %p114 = por %p112, %p113
      %p115 = scmp.ne.s32.totalorder %s106, %s107
      %p116 = scmp.eq.s32.totalorder %s31, 0
      %p117 = por %p115, %p116
      %p118 = scmp.ne.s32.totalorder %s106, %s107
      %p119 = scmp.eq.s32.totalorder %s32, 3
      %p120 = por %p118, %p119
      %p122 = scmp.ne.s32.totalorder %s107, %s121
      %p123 = scmp.eq.s32.totalorder %s32, 0
      %p124 = por %p122, %p123
      %s125 = sld [smem:[#allocation3]]
      %s126 = sld [smem:[#allocation3]]
      %s127 = ssub.s32 %s125, %s126
      %p128 = scmp.eq.s32.totalorder %s127, 0
      %s130 = sadd.s32 %s129, 1
      %s131 = scalar_select %p128, %s129, %s130
      %p134 = pneg %p128
      %p135 = scmp.eq.s32.totalorder %s26, 3
      %p136 = por %p134, %p135
      %p137 = scmp.ne.s32.totalorder %s129, %s132
      %p138 = scmp.eq.s32.totalorder %s26, 0
      %p139 = por %p137, %p138
      %p140 = scmp.ne.s32.totalorder %s129, %s132
      %p141 = scmp.eq.s32.totalorder %s31, 3
      %p142 = por %p140, %p141
      %p143 = scmp.ne.s32.totalorder %s132, %s133
      %p144 = scmp.eq.s32.totalorder %s31, 0
      %p145 = por %p143, %p144
      %p146 = scmp.ne.s32.totalorder %s132, %s133
      %p147 = scmp.eq.s32.totalorder %s32, 3
      %p148 = por %p146, %p147
      %p150 = scmp.ne.s32.totalorder %s133, %s149
      %p151 = scmp.eq.s32.totalorder %s32, 0
      %p152 = por %p150, %p151
      %s153 = ssub.s32 %s26, %s33
      %p154 = scmp.eq.s32.totalorder %s153, 0
      %s156 = sadd.s32 %s155, 1
      %s157 = scalar_select %p154, %s155, %s156
      %p160 = pneg %p154
      %p161 = scmp.eq.s32.totalorder %s26, 3
      %p162 = por %p160, %p161
      %p163 = scmp.ne.s32.totalorder %s155, %s158
      %p164 = scmp.eq.s32.totalorder %s26, 0
      %p165 = por %p163, %p164
      %p166 = scmp.ne.s32.totalorder %s155, %s158
      %p167 = scmp.eq.s32.totalorder %s31, 3
      %p168 = por %p166, %p167
      %p169 = scmp.ne.s32.totalorder %s158, %s159
      %p170 = scmp.eq.s32.totalorder %s31, 0
      %p171 = por %p169, %p170
      %p172 = scmp.ne.s32.totalorder %s158, %s159
      %p173 = scmp.eq.s32.totalorder %s32, 3
      %p174 = por %p172, %p173
      %p176 = scmp.ne.s32.totalorder %s159, %s175
      %p177 = scmp.eq.s32.totalorder %s32, 0
      %p178 = por %p176, %p177
      %s179 = ssub.s32 %s26, %s33
      %p180 = scmp.eq.s32.totalorder %s179, 0
      %s182 = sadd.s32 %s181, 1
      %s183 = scalar_select %p180, %s181, %s182
      %p186 = pneg %p180
      %p187 = scmp.eq.s32.totalorder %s26, 3
      %p188 = por %p186, %p187
      %p189 = scmp.ne.s32.totalorder %s181, %s184
      %p190 = scmp.eq.s32.totalorder %s26, 0
      %p191 = por %p189, %p190
      %p192 = scmp.ne.s32.totalorder %s181, %s184
      %p193 = scmp.eq.s32.totalorder %s31, 3
      %p194 = por %p192, %p193
      %p195 = scmp.ne.s32.totalorder %s184, %s185
      %p196 = scmp.eq.s32.totalorder %s31, 0
      %p197 = por %p195, %p196
      %p198 = scmp.ne.s32.totalorder %s184, %s185
      %p199 = scmp.eq.s32.totalorder %s32, 3
      %p200 = por %p198, %p199
      %p202 = scmp.ne.s32.totalorder %s185, %s201
      %p203 = scmp.eq.s32.totalorder %s32, 0
      %p204 = por %p202, %p203
      %s205 = ssub.s32 %s26, %s33
      %p206 = scmp.eq.s32.totalorder %s205, 0
      %s208 = sadd.s32 %s207, 1
      %s209 = scalar_select %p206, %s207, %s208
      %p212 = pneg %p206
      %p213 = scmp.eq.s32.totalorder %s26, 3
      %p214 = por %p212, %p213
      %p215 = scmp.ne.s32.totalorder %s207, %s210
      %p216 = scmp.eq.s32.totalorder %s26, 0
      %p217 = por %p215, %p216
      %p218 = scmp.ne.s32.totalorder %s207, %s210
      %p219 = scmp.eq.s32.totalorder %s31, 3
      %p220 = por %p218, %p219
      %p221 = scmp.ne.s32.totalorder %s210, %s211
      %p222 = scmp.eq.s32.totalorder %s31, 0
      %p223 = por %p221, %p222
      %p224 = scmp.ne.s32.totalorder %s210, %s211
      %p225 = scmp.eq.s32.totalorder %s32, 3
      %p226 = por %p224, %p225
      %p228 = scmp.ne.s32.totalorder %s211, %s227
      %p229 = scmp.eq.s32.totalorder %s32, 0
      %p230 = por %p228, %p229
      %s231 = ssub.s32 %s26, %s33
      %p232 = scmp.eq.s32.totalorder %s231, 0
      %s234 = sadd.s32 %s233, 1
      %s235 = scalar_select %p232, %s233, %s234
      %p238 = pneg %p232
      %p239 = scmp.eq.s32.totalorder %s26, 3
      %p240 = por %p238, %p239
      %p241 = scmp.ne.s32.totalorder %s233, %s236
      %p242 = scmp.eq.s32.totalorder %s26, 0
      %p243 = por %p241, %p242
      %p244 = scmp.ne.s32.totalorder %s233, %s236
      %p245 = scmp.eq.s32.totalorder %s31, 3
      %p246 = por %p244, %p245
      %p247 = scmp.ne.s32.totalorder %s236, %s237
      %p248 = scmp.eq.s32.totalorder %s31, 0
      %p249 = por %p247, %p248
      %p250 = scmp.ne.s32.totalorder %s236, %s237
      %p251 = scmp.eq.s32.totalorder %s32, 3
      %p252 = por %p250, %p251
      %p254 = scmp.ne.s32.totalorder %s237, %s253
      %p255 = scmp.eq.s32.totalorder %s32, 0
      %p256 = por %p254, %p255
      %p257 = scmp.le.s32.totalorder 1, %s26
      %p258 = scmp.lt.s32.totalorder %s26, 5
      %p259 = pnand %p257, %p258
      %p260 = pneg %p259
      // Predicated region
      $region9: #{tpu_custom_call.1} parent=5 // pred_check
        _
      $region10: #{tpu_custom_call.1} parent=5 // pred_check_branch
        %262 = sbr.rel (%p259) target = $region12
      $region11: #{tpu_custom_call.1} parent=5 // pred_region
        %s263 = ssub.s32 %s26, 1
        // Predicated region
        $region13: #{tpu_custom_call.1} parent=11 // pred_check
          %p264 = pneg %p47
        $region14: #{tpu_custom_call.1} parent=11 // pred_check_branch
          %266 = sbr.rel (%p264) target = $region16
        $region15: #{tpu_custom_call.1} parent=11 // pred_region
          %s268 = ssub.s32 256, 256
          %269 = vsyncadd [#allocation5], %s268
          %s271 = sshll.u32 [#allocation4], 4
          %s272 = int_to_ptr.vmem [resolvable:$true] %s271
          %274 = dma.hbm_to_vmem [thread:$0]  %s1, 256, %s272, [#allocation5]
        $region16: #{tpu_custom_call.1} parent=11 // pred_fallthru
          _
        // Predicated region
        $region17: #{tpu_custom_call.1} parent=11 // pred_check
          %p275 = pneg %p68
        $region18: #{tpu_custom_call.1} parent=11 // pred_check_branch
          %277 = sbr.rel (%p275) target = $region20
        $region19: #{tpu_custom_call.1} parent=11 // pred_region
          _
        $region20: #{tpu_custom_call.1} parent=11 // pred_fallthru
          _
        // Predicated region
        $region21: #{tpu_custom_call.1} parent=11 // pred_check
          %p278 = pneg %p96
        $region22: #{tpu_custom_call.1} parent=11 // pred_check_branch
          %280 = sbr.rel (%p278) target = $region24
        $region23: #{tpu_custom_call.1} parent=11 // pred_region
          %s281 = sld [smem:[#allocation3]]
          %p282 = scmp.lt.s32.totalorder %s281, 1
          %s283 = scalar_select %p282, %s281, 1
          %s284 = smul.addr %s283, 32
          %s285 = smul.addr %s284, 8
          %s286 = scalar_lea.vmem %s3, %s285
          %s287 = sld [smem:[#allocation3]]
        $region24: #{tpu_custom_call.1} parent=11 // pred_fallthru
          _
        // Predicated region
        $region25: #{tpu_custom_call.1} parent=11 // pred_check
          %p288 = pneg %p117
        $region26: #{tpu_custom_call.1} parent=11 // pred_check_branch
          %290 = sbr.rel (%p288) target = $region28
        $region27: #{tpu_custom_call.1} parent=11 // pred_region
          %s292 = ssub.s32 128, 128
          %293 = vsyncadd [#allocation7], %s292
          %s295 = sshll.u32 [#allocation6], 4
          %s296 = int_to_ptr.vmem [resolvable:$true] %s295
          %298 = dma.hbm_to_vmem [thread:$0]  %s4, 128, %s296, [#allocation7]
        $region28: #{tpu_custom_call.1} parent=11 // pred_fallthru
          _
        // Predicated region
        $region29: #{tpu_custom_call.1} parent=11 // pred_check
          %p299 = pneg %p145
        $region30: #{tpu_custom_call.1} parent=11 // pred_check_branch
          %301 = sbr.rel (%p299) target = $region32
        $region31: #{tpu_custom_call.1} parent=11 // pred_region
          %s302 = sld [smem:[#allocation3]]
          %s304 = ssub.s32 32, 32
          %305 = vsyncadd [#allocation7], %s304
          %s306 = smul.addr %s302, 2
          %s307 = smul.addr %s306, 16
          %s308 = scalar_lea.hbm %s5, %s307
          %s309 = sshll.u32 [#allocation8], 4
          %s310 = int_to_ptr.vmem [resolvable:$true] %s309
          %315 = dma.hbm_to_vmem [thread:$0]  %s308, 32, %s310, [#allocation7], 16, 16, 1
        $region32: #{tpu_custom_call.1} parent=11 // pred_fallthru
          _
      $region12: #{tpu_custom_call.1} parent=5 // pred_fallthru
        _
      %p316 = scmp.lt.s32.totalorder %s26, 4
      // Predicated region
      $region33: #{tpu_custom_call.1} parent=5 // pred_check
        %p317 = pneg %p316
      $region34: #{tpu_custom_call.1} parent=5 // pred_check_branch
        %319 = sbr.rel (%p317) target = $region36
      $region35: #{tpu_custom_call.1} parent=5 // pred_region
        // Predicated region
        $region37: #{tpu_custom_call.1} parent=35 // pred_check
          %p320 = pneg %p165
        $region38: #{tpu_custom_call.1} parent=35 // pred_check_branch
          %322 = sbr.rel (%p320) target = $region40
        $region39: #{tpu_custom_call.1} parent=35 // pred_region
          %s323 = sand.u32 %s155, 1
          %s324 = scalar_lea.sflag [#allocation10], %s323
          %s325 = sand.u32 %s155, 1
          %s326 = smul.addr %s325, 192
          %s327 = scalar_lea.vmem [#allocation9], %s326
          %s329 = ssub.s32 3072, 3072
          %330 = vsyncadd %s324, %s329
          %s331 = smul.addr %s26, 48
          %s332 = smul.addr %s331, 64
          %s333 = scalar_lea.hbm %s6, %s332
          %s334 = sshll.u32 %s327, 4
          %s335 = int_to_ptr.vmem [resolvable:$true] %s334
          %340 = dma.hbm_to_vmem [thread:$0]  %s333, 3072, %s335, %s324, 64, 64, 4
        $region40: #{tpu_custom_call.1} parent=35 // pred_fallthru
          _
        // Predicated region
        $region41: #{tpu_custom_call.1} parent=35 // pred_check
          %p341 = pneg %p191
        $region42: #{tpu_custom_call.1} parent=35 // pred_check_branch
          %343 = sbr.rel (%p341) target = $region44
        $region43: #{tpu_custom_call.1} parent=35 // pred_region
          %p344 = scmp.lt.s32.totalorder %s26, 3
          %s345 = scalar_select %p344, %s26, 3
          %s346 = smul.addr %s345, 16
          %s347 = smul.addr %s346, 4
          %s348 = scalar_lea.vmem %s7, %s347
        $region44: #{tpu_custom_call.1} parent=35 // pred_fallthru
          _
        // Predicated region
        $region45: #{tpu_custom_call.1} parent=35 // pred_check
          %p349 = pneg %p217
        $region46: #{tpu_custom_call.1} parent=35 // pred_check_branch
          %351 = sbr.rel (%p349) target = $region48
        $region47: #{tpu_custom_call.1} parent=35 // pred_region
          %p352 = scmp.lt.s32.totalorder %s26, 3
          %s353 = scalar_select %p352, %s26, 3
          %s354 = smul.addr %s353, 8
          %s355 = scalar_lea.vmem %s8, %s354
        $region48: #{tpu_custom_call.1} parent=35 // pred_fallthru
          _
      $region36: #{tpu_custom_call.1} parent=5 // pred_fallthru
        _
      %p356 = scmp.le.s32.totalorder 1, %s26
      %p357 = scmp.lt.s32.totalorder %s26, 5
      %p358 = pnand %p356, %p357
      %p359 = pneg %p358
      // Predicated region
      $region49: #{tpu_custom_call.1} parent=5 // pred_check
        _
      $region50: #{tpu_custom_call.1} parent=5 // pred_check_branch
        %361 = sbr.rel (%p358) target = $region52
      $region51: #{tpu_custom_call.1} parent=5 // pred_region
        %s362 = ssub.s32 %s26, 1
        // Predicated region
        $region53: #{tpu_custom_call.1} parent=51 // pred_check
          %p363 = pneg %p47
        $region54: #{tpu_custom_call.1} parent=51 // pred_check_branch
          %365 = sbr.rel (%p363) target = $region56
        $region55: #{tpu_custom_call.1} parent=51 // pred_region
          %366 = dma.done [#allocation5], 256
        $region56: #{tpu_custom_call.1} parent=51 // pred_fallthru
          _
        // Predicated region
        $region57: #{tpu_custom_call.1} parent=51 // pred_check
          %p367 = pneg %p117
        $region58: #{tpu_custom_call.1} parent=51 // pred_check_branch
          %369 = sbr.rel (%p367) target = $region60
        $region59: #{tpu_custom_call.1} parent=51 // pred_region
          %370 = dma.done [#allocation7], 128
        $region60: #{tpu_custom_call.1} parent=51 // pred_fallthru
          _
        // Predicated region
        $region61: #{tpu_custom_call.1} parent=51 // pred_check
          %p371 = pneg %p145
        $region62: #{tpu_custom_call.1} parent=51 // pred_check_branch
          %373 = sbr.rel (%p371) target = $region64
        $region63: #{tpu_custom_call.1} parent=51 // pred_region
          %374 = dma.done [#allocation7], 32
        $region64: #{tpu_custom_call.1} parent=51 // pred_fallthru
          _
        %s375 = sand.u32 %s158, 1
        %s376 = scalar_lea.sflag [#allocation10], %s375
        %s377 = sand.u32 %s158, 1
        %s378 = smul.addr %s377, 192
        %s379 = scalar_lea.vmem [#allocation9], %s378
        // Predicated region
        $region65: #{tpu_custom_call.1} parent=51 // pred_check
          %p380 = pneg %p171
        $region66: #{tpu_custom_call.1} parent=51 // pred_check_branch
          %382 = sbr.rel (%p380) target = $region68
        $region67: #{tpu_custom_call.1} parent=51 // pred_region
          %383 = dma.done %s376, 3072
        $region68: #{tpu_custom_call.1} parent=51 // pred_fallthru
          _
        %p384 = pneg %p47
        %p385 = pneg %p44
        %p386 = pneg %p68
        %p387 = pneg %p65
        %s388 = sld [smem:[#allocation3]]
        %p389 = scmp.lt.s32.totalorder %s388, 1
        %s390 = scalar_select %p389, %s388, 1
        %s391 = smul.addr %s390, 32
        %s392 = smul.addr %s391, 8
        %s393 = scalar_lea.vmem %s3, %s392
        %p394 = pneg %p96
        %p395 = pneg %p93
        %p396 = pneg %p117
        %p397 = pneg %p114
        %p398 = pneg %p145
        %p399 = pneg %p142
        %s400 = sand.u32 %s158, 1
        %s401 = scalar_lea.sflag [#allocation10], %s400
        %s402 = sand.u32 %s158, 1
        %s403 = smul.addr %s402, 192
        %s404 = scalar_lea.vmem [#allocation9], %s403
        %p405 = pneg %p171
        %p406 = pneg %p168
        %p407 = scmp.lt.s32.totalorder %s31, 3
        %s408 = scalar_select %p407, %s31, 3
        %s409 = smul.addr %s408, 16
        %s410 = smul.addr %s409, 4
        %s411 = scalar_lea.vmem %s7, %s410
        %p412 = pneg %p197
        %p413 = pneg %p194
        %p414 = scmp.lt.s32.totalorder %s31, 3
        %s415 = scalar_select %p414, %s31, 3
        %s416 = smul.addr %s415, 8
        %s417 = scalar_lea.vmem %s8, %s416
        %p418 = pneg %p223
        %p419 = pneg %p220
        %p420 = pneg %p249
        %p421 = pneg %p246
        %p422 = scmp.lt.s32.totalorder %s31, 3
        %s423 = scalar_select %p422, %s31, 3
        %s424 = smul.addr %s423, 8
        %s425 = scalar_lea.vmem %s9, %s424
        %s426 = sld [smem:[#allocation3]]
        %p427 = scmp.lt.s32.totalorder %s426, 1
        %s428 = scalar_select %p427, %s426, 1
        %s429 = smul.addr %s428, 32
        %s430 = smul.addr %s429, 8
        %s431 = scalar_lea.vmem %s3, %s430
        %s432 = sld [smem:[#allocation3]]
        %s433 = sld [smem:[#allocation3]]
        %p434 = scmp.lt.s32.totalorder %s31, 3
        %s435 = scalar_select %p434, %s31, 3
        %s436 = smul.addr %s435, 16
        %s437 = smul.addr %s436, 4
        %s438 = scalar_lea.vmem %s7, %s437
        %p439 = scmp.lt.s32.totalorder %s31, 3
        %s440 = scalar_select %p439, %s31, 3
        %s441 = smul.addr %s440, 8
        %s442 = scalar_lea.vmem %s8, %s441
        %p443 = scmp.lt.s32.totalorder %s31, 3
        %s444 = scalar_select %p443, %s31, 3
        %s445 = smul.addr %s444, 8
        %s446 = scalar_lea.vmem %s9, %s445
        %v447 = vld [vmem:[#allocation4] sm:$0xff]
        %v448 = vld [vmem:[#allocation4 + $0x8] sm:$0xff]
        %v449 = vld [vmem:[%s2] sm:$0xff]
        %v450 = vld [vmem:[%s2 + $0x8] sm:$0xff]
        %v451 = vld [vmem:[%s2 + $0x10] sm:$0xff]
        %v452 = vld [vmem:[%s2 + $0x18] sm:$0xff]
        %v453 = vld [vmem:[%s2 + $0x20] sm:$0xff]
        %v454 = vld [vmem:[%s2 + $0x28] sm:$0xff]
        %v455 = vld [vmem:[%s2 + $0x30] sm:$0xff]
        %v456 = vld [vmem:[%s2 + $0x38] sm:$0xff]
        %v457 = vld [vmem:[%s2 + $0x40] sm:$0xff]
        %v458 = vld [vmem:[%s2 + $0x48] sm:$0xff]
        %v459 = vld [vmem:[%s2 + $0x50] sm:$0xff]
        %v460 = vld [vmem:[%s2 + $0x58] sm:$0xff]
        %v461 = vld [vmem:[%s2 + $0x60] sm:$0xff]
        %v462 = vld [vmem:[%s2 + $0x68] sm:$0xff]
        %v463 = vld [vmem:[%s2 + $0x70] sm:$0xff]
        %v464 = vld [vmem:[%s2 + $0x78] sm:$0xff]
        %v465 = vld [vmem:[%s2 + $0x80] sm:$0xff]
        %v466 = vld [vmem:[%s2 + $0x88] sm:$0xff]
        %v467 = vld [vmem:[%s2 + $0x90] sm:$0xff]
        %v468 = vld [vmem:[%s2 + $0x98] sm:$0xff]
        %v469 = vld [vmem:[%s2 + $0xa0] sm:$0xff]
        %v470 = vld [vmem:[%s2 + $0xa8] sm:$0xff]
        %v471 = vld [vmem:[%s2 + $0xb0] sm:$0xff]
        %v472 = vld [vmem:[%s2 + $0xb8] sm:$0xff]
        %v473 = vld [vmem:[%s2 + $0xc0] sm:$0xff]
        %v474 = vld [vmem:[%s2 + $0xc8] sm:$0xff]
        %v475 = vld [vmem:[%s2 + $0xd0] sm:$0xff]
        %v476 = vld [vmem:[%s2 + $0xd8] sm:$0xff]
        %v477 = vld [vmem:[%s2 + $0xe0] sm:$0xff]
        %v478 = vld [vmem:[%s2 + $0xe8] sm:$0xff]
        %v479 = vld [vmem:[%s2 + $0xf0] sm:$0xff]
        %v480 = vld [vmem:[%s2 + $0xf8] sm:$0xff]
        %s481 = scalar_lea.vmem %s2, 384
        %v482 = vld [vmem:[%s481] sm:$0xff]
        %v483 = vld [vmem:[%s481 + $0x8] sm:$0xff]
        %v484 = vld [vmem:[%s481 + $0x10] sm:$0xff]
        %v485 = vld [vmem:[%s481 + $0x18] sm:$0xff]
        %v486 = vld [vmem:[%s481 + $0x20] sm:$0xff]
        %v487 = vld [vmem:[%s481 + $0x28] sm:$0xff]
        %v488 = vld [vmem:[%s481 + $0x30] sm:$0xff]
        %v489 = vld [vmem:[%s481 + $0x38] sm:$0xff]
        %v490 = vld [vmem:[%s481 + $0x40] sm:$0xff]
        %v491 = vld [vmem:[%s481 + $0x48] sm:$0xff]
        %v492 = vld [vmem:[%s481 + $0x50] sm:$0xff]
        %v493 = vld [vmem:[%s481 + $0x58] sm:$0xff]
        %v494 = vld [vmem:[%s481 + $0x60] sm:$0xff]
        %v495 = vld [vmem:[%s481 + $0x68] sm:$0xff]
        %v496 = vld [vmem:[%s481 + $0x70] sm:$0xff]
        %v497 = vld [vmem:[%s481 + $0x78] sm:$0xff]
        %v498 = vld [vmem:[%s481 + $0x80] sm:$0xff]
        %v499 = vld [vmem:[%s481 + $0x88] sm:$0xff]
        %v500 = vld [vmem:[%s481 + $0x90] sm:$0xff]
        %v501 = vld [vmem:[%s481 + $0x98] sm:$0xff]
        %v502 = vld [vmem:[%s481 + $0xa0] sm:$0xff]
        %v503 = vld [vmem:[%s481 + $0xa8] sm:$0xff]
        %v504 = vld [vmem:[%s481 + $0xb0] sm:$0xff]
        %v505 = vld [vmem:[%s481 + $0xb8] sm:$0xff]
        %v506 = vld [vmem:[%s481 + $0xc0] sm:$0xff]
        %v507 = vld [vmem:[%s481 + $0xc8] sm:$0xff]
        %v508 = vld [vmem:[%s481 + $0xd0] sm:$0xff]
        %v509 = vld [vmem:[%s481 + $0xd8] sm:$0xff]
        %v510 = vld [vmem:[%s481 + $0xe0] sm:$0xff]
        %v511 = vld [vmem:[%s481 + $0xe8] sm:$0xff]
        %v512 = vld [vmem:[%s481 + $0xf0] sm:$0xff]
        %v513 = vld [vmem:[%s481 + $0xf8] sm:$0xff]
        %v514 = vld [vmem:[%s379] sm:$0xf]
        %v515 = vld [vmem:[%s379 + $0x4] sm:$0xf]
        %v516 = vld [vmem:[%s379 + $0x8] sm:$0xf]
        %v517 = vld [vmem:[%s379 + $0xc] sm:$0xf]
        %v518 = vld [vmem:[%s379 + $0x10] sm:$0xf]
        %v519 = vld [vmem:[%s379 + $0x14] sm:$0xf]
        %v520 = vld [vmem:[%s379 + $0x18] sm:$0xf]
        %v521 = vld [vmem:[%s379 + $0x1c] sm:$0xf]
        %v522 = vld [vmem:[%s379 + $0x20] sm:$0xf]
        %v523 = vld [vmem:[%s379 + $0x24] sm:$0xf]
        %v524 = vld [vmem:[%s379 + $0x28] sm:$0xf]
        %v525 = vld [vmem:[%s379 + $0x2c] sm:$0xf]
        %v526 = vld [vmem:[%s379 + $0x30] sm:$0xf]
        %v527 = vld [vmem:[%s379 + $0x34] sm:$0xf]
        %v528 = vld [vmem:[%s379 + $0x38] sm:$0xf]
        %v529 = vld [vmem:[%s379 + $0x3c] sm:$0xf]
        %v530 = vld [vmem:[%s379 + $0x40] sm:$0xf]
        %v531 = vld [vmem:[%s379 + $0x44] sm:$0xf]
        %v532 = vld [vmem:[%s379 + $0x48] sm:$0xf]
        %v533 = vld [vmem:[%s379 + $0x4c] sm:$0xf]
        %v534 = vld [vmem:[%s379 + $0x50] sm:$0xf]
        %v535 = vld [vmem:[%s379 + $0x54] sm:$0xf]
        %v536 = vld [vmem:[%s379 + $0x58] sm:$0xf]
        %v537 = vld [vmem:[%s379 + $0x5c] sm:$0xf]
        %v538 = vld [vmem:[%s379 + $0x60] sm:$0xf]
        %v539 = vld [vmem:[%s379 + $0x64] sm:$0xf]
        %v540 = vld [vmem:[%s379 + $0x68] sm:$0xf]
        %v541 = vld [vmem:[%s379 + $0x6c] sm:$0xf]
        %v542 = vld [vmem:[%s379 + $0x70] sm:$0xf]
        %v543 = vld [vmem:[%s379 + $0x74] sm:$0xf]
        %v544 = vld [vmem:[%s379 + $0x78] sm:$0xf]
        %v545 = vld [vmem:[%s379 + $0x7c] sm:$0xf]
        %v546 = vunpack.c.l.bf16 %v514
        %v547 = vunpack.c.l.bf16 %v515
        %v548 = vunpack.c.l.bf16 %v516
        %v549 = vunpack.c.l.bf16 %v517
        %v550 = vunpack.c.l.bf16 %v518
        %v551 = vunpack.c.l.bf16 %v519
        %v552 = vunpack.c.l.bf16 %v520
        %v553 = vunpack.c.l.bf16 %v521
        %v554 = vunpack.c.l.bf16 %v522
        %v555 = vunpack.c.l.bf16 %v523
        %v556 = vunpack.c.l.bf16 %v524
        %v557 = vunpack.c.l.bf16 %v525
        %v558 = vunpack.c.l.bf16 %v526
        %v559 = vunpack.c.l.bf16 %v527
        %v560 = vunpack.c.l.bf16 %v528
        %v561 = vunpack.c.l.bf16 %v529
        %v562 = vunpack.c.l.bf16 %v530
        %v563 = vunpack.c.l.bf16 %v531
        %v564 = vunpack.c.l.bf16 %v532
        %v565 = vunpack.c.l.bf16 %v533
        %v566 = vunpack.c.l.bf16 %v534
        %v567 = vunpack.c.l.bf16 %v535
        %v568 = vunpack.c.l.bf16 %v536
        %v569 = vunpack.c.l.bf16 %v537
        %v570 = vunpack.c.l.bf16 %v538
        %v571 = vunpack.c.l.bf16 %v539
        %v572 = vunpack.c.l.bf16 %v540
        %v573 = vunpack.c.l.bf16 %v541
        %v574 = vunpack.c.l.bf16 %v542
        %v575 = vunpack.c.l.bf16 %v543
        %v576 = vunpack.c.l.bf16 %v544
        %v577 = vunpack.c.l.bf16 %v545
        %v578 = vld [vmem:[#allocation6] sm:$0x1]
        %v579 = vld [vmem:[#allocation6 + $0x1] sm:$0x1]
        %v580 = vld [vmem:[%s442] sm:$0x1]
        %v581 = vmul.f32 %v482, 0.5
        %v582 = vmul.f32 %v483, 0.5
        %v583 = vmul.f32 %v484, 0.5
        %v584 = vmul.f32 %v485, 0.5
        %v585 = vmul.f32 %v486, 0.5
        %v586 = vmul.f32 %v487, 0.5
        %v587 = vmul.f32 %v488, 0.5
        %v588 = vmul.f32 %v489, 0.5
        %v589 = vmul.f32 %v490, 0.5
        %v590 = vmul.f32 %v491, 0.5
        %v591 = vmul.f32 %v492, 0.5
        %v592 = vmul.f32 %v493, 0.5
        %v593 = vmul.f32 %v494, 0.5
        %v594 = vmul.f32 %v495, 0.5
        %v595 = vmul.f32 %v496, 0.5
        %v596 = vmul.f32 %v497, 0.5
        %v597 = vmul.f32 %v498, 0.5
        %v598 = vmul.f32 %v499, 0.5
        %v599 = vmul.f32 %v500, 0.5
        %v600 = vmul.f32 %v501, 0.5
        %v601 = vmul.f32 %v502, 0.5
        %v602 = vmul.f32 %v503, 0.5
        %v603 = vmul.f32 %v504, 0.5
        %v604 = vmul.f32 %v505, 0.5
        %v605 = vmul.f32 %v506, 0.5
        %v606 = vmul.f32 %v507, 0.5
        %v607 = vmul.f32 %v508, 0.5
        %v608 = vmul.f32 %v509, 0.5
        %v609 = vmul.f32 %v510, 0.5
        %v610 = vmul.f32 %v511, 0.5
        %v611 = vmul.f32 %v512, 0.5
        %v612 = vmul.f32 %v513, 0.5
        %v613 = vmul.f32 %v581, 1.442695
        %v614 = vpow.pop %v613
        %v615 = vmul.f32 %v582, 1.442695
        %v616 = vpow.pop %v615
        %v617 = vmul.f32 %v583, 1.442695
        %v618 = vpow.pop %v617
        %v619 = vmul.f32 %v584, 1.442695
        %v620 = vpow.pop %v619
        %v621 = vmul.f32 %v585, 1.442695
        %v622 = vpow.pop %v621
        %v623 = vmul.f32 %v586, 1.442695
        %v624 = vpow.pop %v623
        %v625 = vmul.f32 %v587, 1.442695
        %v626 = vpow.pop %v625
        %v627 = vmul.f32 %v588, 1.442695
        %v628 = vpow.pop %v627
        %v629 = vmul.f32 %v589, 1.442695
        %v630 = vpow.pop %v629
        %v631 = vmul.f32 %v590, 1.442695
        %v632 = vpow.pop %v631
        %v633 = vmul.f32 %v591, 1.442695
        %v634 = vpow.pop %v633
        %v635 = vmul.f32 %v592, 1.442695
        %v636 = vpow.pop %v635
        %v637 = vmul.f32 %v593, 1.442695
        %v638 = vpow.pop %v637
        %v639 = vmul.f32 %v594, 1.442695
        %v640 = vpow.pop %v639
        %v641 = vmul.f32 %v595, 1.442695
        %v642 = vpow.pop %v641
        %v643 = vmul.f32 %v596, 1.442695
        %v644 = vpow.pop %v643
        %v645 = vmul.f32 %v597, 1.442695
        %v646 = vpow.pop %v645
        %v647 = vmul.f32 %v598, 1.442695
        %v648 = vpow.pop %v647
        %v649 = vmul.f32 %v599, 1.442695
        %v650 = vpow.pop %v649
        %v651 = vmul.f32 %v600, 1.442695
        %v652 = vpow.pop %v651
        %v653 = vmul.f32 %v601, 1.442695
        %v654 = vpow.pop %v653
        %v655 = vmul.f32 %v602, 1.442695
        %v656 = vpow.pop %v655
        %v657 = vmul.f32 %v603, 1.442695
        %v658 = vpow.pop %v657
        %v659 = vmul.f32 %v604, 1.442695
        %v660 = vpow.pop %v659
        %v661 = vmul.f32 %v605, 1.442695
        %v662 = vpow.pop %v661
        %v663 = vmul.f32 %v606, 1.442695
        %v664 = vpow.pop %v663
        %v665 = vmul.f32 %v607, 1.442695
        %v666 = vpow.pop %v665
        %v667 = vmul.f32 %v608, 1.442695
        %v668 = vpow.pop %v667
        %v669 = vmul.f32 %v609, 1.442695
        %v670 = vpow.pop %v669
        %v671 = vmul.f32 %v610, 1.442695
        %v672 = vpow.pop %v671
        %v673 = vmul.f32 %v611, 1.442695
        %v674 = vpow.pop %v673
        %v675 = vmul.f32 %v612, 1.442695
        %v676 = vpow.pop %v675
        %v677 = vmul.f32 %v614, %v546
        %v678 = vmul.f32 %v616, %v547
        %v679 = vmul.f32 %v618, %v548
        %v680 = vmul.f32 %v620, %v549
        %v681 = vmul.f32 %v622, %v550
        %v682 = vmul.f32 %v624, %v551
        %v683 = vmul.f32 %v626, %v552
        %v684 = vmul.f32 %v628, %v553
        %v685 = vmul.f32 %v630, %v554
        %v686 = vmul.f32 %v632, %v555
        %v687 = vmul.f32 %v634, %v556
        %v688 = vmul.f32 %v636, %v557
        %v689 = vmul.f32 %v638, %v558
        %v690 = vmul.f32 %v640, %v559
        %v691 = vmul.f32 %v642, %v560
        %v692 = vmul.f32 %v644, %v561
        %v693 = vmul.f32 %v646, %v562
        %v694 = vmul.f32 %v648, %v563
        %v695 = vmul.f32 %v650, %v564
        %v696 = vmul.f32 %v652, %v565
        %v697 = vmul.f32 %v654, %v566
        %v698 = vmul.f32 %v656, %v567
        %v699 = vmul.f32 %v658, %v568
        %v700 = vmul.f32 %v660, %v569
        %v701 = vmul.f32 %v662, %v570
        %v702 = vmul.f32 %v664, %v571
        %v703 = vmul.f32 %v666, %v572
        %v704 = vmul.f32 %v668, %v573
        %v705 = vmul.f32 %v670, %v574
        %v706 = vmul.f32 %v672, %v575
        %v707 = vmul.f32 %v674, %v576
        %v708 = vmul.f32 %v676, %v577
        %v709 = vadd.f32 %v449, %v677
        %v710 = vadd.f32 %v450, %v678
        %v711 = vadd.f32 %v451, %v679
        %v712 = vadd.f32 %v452, %v680
        %v713 = vadd.f32 %v453, %v681
        %v714 = vadd.f32 %v454, %v682
        %v715 = vadd.f32 %v455, %v683
        %v716 = vadd.f32 %v456, %v684
        %v717 = vadd.f32 %v457, %v685
        %v718 = vadd.f32 %v458, %v686
        %v719 = vadd.f32 %v459, %v687
        %v720 = vadd.f32 %v460, %v688
        %v721 = vadd.f32 %v461, %v689
        %v722 = vadd.f32 %v462, %v690
        %v723 = vadd.f32 %v463, %v691
        %v724 = vadd.f32 %v464, %v692
        %v725 = vadd.f32 %v465, %v693
        %v726 = vadd.f32 %v466, %v694
        %v727 = vadd.f32 %v467, %v695
        %v728 = vadd.f32 %v468, %v696
        %v729 = vadd.f32 %v469, %v697
        %v730 = vadd.f32 %v470, %v698
        %v731 = vadd.f32 %v471, %v699
        %v732 = vadd.f32 %v472, %v700
        %v733 = vadd.f32 %v473, %v701
        %v734 = vadd.f32 %v474, %v702
        %v735 = vadd.f32 %v475, %v703
        %v736 = vadd.f32 %v476, %v704
        %v737 = vadd.f32 %v477, %v705
        %v738 = vadd.f32 %v478, %v706
        %v739 = vadd.f32 %v479, %v707
        %v740 = vadd.f32 %v480, %v708
        %v741 = vmul.f32 %v579, 0.5
        %v742 = vmul.f32 %v741, 1.442695
        %v743 = vpow.pop %v742
        %v744 = vmul.f32 %v743, %v580
        %v745 = vadd.f32 %v578, %v744
        %v746 = vlaneseq
        %v747 = vshrl.u32 %v746, 7
        %v748 = vsub.s32 0, %v747
        %v749 = vrot.slane %v745, %v748
        %750 = vmatprep.subr.mxu0 0.0
        %751 = vmatpush1.msra.mxu0 %v709
        %752 = vmatprep.subr.mxu0 0.0
        %753 = vmatpush1.msra.mxu0 %v710
        %754 = vmatprep.subr.mxu0 0.0
        %755 = vmatpush1.msra.mxu0 %v711
        %756 = vmatprep.subr.mxu0 0.0
        %757 = vmatpush1.msra.mxu0 %v712
        %758 = vmatprep.subr.mxu0 0.0
        %759 = vmatpush1.msra.mxu0 %v713
        %760 = vmatprep.subr.mxu0 0.0
        %761 = vmatpush1.msra.mxu0 %v714
        %762 = vmatprep.subr.mxu0 0.0
        %763 = vmatpush1.msra.mxu0 %v715
        %764 = vmatprep.subr.mxu0 0.0
        %765 = vmatpush1.msra.mxu0 %v716
        %766 = vmatprep.subr.mxu0 0.0
        %767 = vmatpush1.msra.mxu0 %v717
        %768 = vmatprep.subr.mxu0 0.0
        %769 = vmatpush1.msra.mxu0 %v718
        %770 = vmatprep.subr.mxu0 0.0
        %771 = vmatpush1.msra.mxu0 %v719
        %772 = vmatprep.subr.mxu0 0.0
        %773 = vmatpush1.msra.mxu0 %v720
        %774 = vmatprep.subr.mxu0 0.0
        %775 = vmatpush1.msra.mxu0 %v721
        %776 = vmatprep.subr.mxu0 0.0
        %777 = vmatpush1.msra.mxu0 %v722
        %778 = vmatprep.subr.mxu0 0.0
        %779 = vmatpush1.msra.mxu0 %v723
        %780 = vmatprep.subr.mxu0 0.0
        %781 = vmatpush1.msra.mxu0 %v724
        %782 = vmatprep.subr.mxu0 0.0
        %783 = vmatpush1.msra.mxu0 %v725
        %784 = vmatprep.subr.mxu0 0.0
        %785 = vmatpush1.msra.mxu0 %v726
        %786 = vmatprep.subr.mxu0 0.0
        %787 = vmatpush1.msra.mxu0 %v727
        %788 = vmatprep.subr.mxu0 0.0
        %789 = vmatpush1.msra.mxu0 %v728
        %790 = vmatprep.subr.mxu0 0.0
        %791 = vmatpush1.msra.mxu0 %v729
        %792 = vmatprep.subr.mxu0 0.0
        %793 = vmatpush1.msra.mxu0 %v730
        %794 = vmatprep.subr.mxu0 0.0
        %795 = vmatpush1.msra.mxu0 %v731
        %796 = vmatprep.subr.mxu0 0.0
        %797 = vmatpush1.msra.mxu0 %v732
        %798 = vmatprep.subr.mxu0 0.0
        %799 = vmatpush1.msra.mxu0 %v733
        %800 = vmatprep.subr.mxu0 0.0
        %801 = vmatpush1.msra.mxu0 %v734
        %802 = vmatprep.subr.mxu0 0.0
        %803 = vmatpush1.msra.mxu0 %v735
        %804 = vmatprep.subr.mxu0 0.0
        %805 = vmatpush1.msra.mxu0 %v736
        %806 = vmatprep.subr.mxu0 0.0
        %807 = vmatpush1.msra.mxu0 %v737
        %808 = vmatprep.subr.mxu0 0.0
        %809 = vmatpush1.msra.mxu0 %v738
        %810 = vmatprep.subr.mxu0 0.0
        %811 = vmatpush1.msra.mxu0 %v739
        %812 = vmatprep.subr.mxu0 0.0
        %813 = vmatpush1.msra.mxu0 %v740
        %814 = vmatprep.mubr.f32.mxu0 %v448
        %815 = vmatmul.mubr.f32.gmra.mrb[0].mxu0 %v447
        %v816 = vpop.f32.mrb[0].mxu0
        %v817 = vadd.f32 %v749, %v816
        %v818 = vpop.f32.mrb[0].mxu0
        %819 = vdwg.mxu0
        %v820 = vmax.f32 %v817, 0.0
        %v821 = vld [vmem:[%s2 + $0x100] sm:$0xff]
        %v822 = vld [vmem:[%s2 + $0x108] sm:$0xff]
        %v823 = vld [vmem:[%s2 + $0x110] sm:$0xff]
        %v824 = vld [vmem:[%s2 + $0x118] sm:$0xff]
        %v825 = vld [vmem:[%s2 + $0x120] sm:$0xff]
        %v826 = vld [vmem:[%s2 + $0x128] sm:$0xff]
        %v827 = vld [vmem:[%s2 + $0x130] sm:$0xff]
        %v828 = vld [vmem:[%s2 + $0x138] sm:$0xff]
        %v829 = vld [vmem:[%s2 + $0x140] sm:$0xff]
        %v830 = vld [vmem:[%s2 + $0x148] sm:$0xff]
        %v831 = vld [vmem:[%s2 + $0x150] sm:$0xff]
        %v832 = vld [vmem:[%s2 + $0x158] sm:$0xff]
        %v833 = vld [vmem:[%s2 + $0x160] sm:$0xff]
        %v834 = vld [vmem:[%s2 + $0x168] sm:$0xff]
        %v835 = vld [vmem:[%s2 + $0x170] sm:$0xff]
        %v836 = vld [vmem:[%s2 + $0x178] sm:$0xff]
        %v837 = vld [vmem:[%s481 + $0x100] sm:$0xff]
        %v838 = vld [vmem:[%s481 + $0x108] sm:$0xff]
        %v839 = vld [vmem:[%s481 + $0x110] sm:$0xff]
        %v840 = vld [vmem:[%s481 + $0x118] sm:$0xff]
        %v841 = vld [vmem:[%s481 + $0x120] sm:$0xff]
        %v842 = vld [vmem:[%s481 + $0x128] sm:$0xff]
        %v843 = vld [vmem:[%s481 + $0x130] sm:$0xff]
        %v844 = vld [vmem:[%s481 + $0x138] sm:$0xff]
        %v845 = vld [vmem:[%s481 + $0x140] sm:$0xff]
        %v846 = vld [vmem:[%s481 + $0x148] sm:$0xff]
        %v847 = vld [vmem:[%s481 + $0x150] sm:$0xff]
        %v848 = vld [vmem:[%s481 + $0x158] sm:$0xff]
        %v849 = vld [vmem:[%s481 + $0x160] sm:$0xff]
        %v850 = vld [vmem:[%s481 + $0x168] sm:$0xff]
        %v851 = vld [vmem:[%s481 + $0x170] sm:$0xff]
        %v852 = vld [vmem:[%s481 + $0x178] sm:$0xff]
        %v853 = vld [vmem:[%s379 + $0x80] sm:$0xf]
        %v854 = vld [vmem:[%s379 + $0x84] sm:$0xf]
        %v855 = vld [vmem:[%s379 + $0x88] sm:$0xf]
        %v856 = vld [vmem:[%s379 + $0x8c] sm:$0xf]
        %v857 = vld [vmem:[%s379 + $0x90] sm:$0xf]
        %v858 = vld [vmem:[%s379 + $0x94] sm:$0xf]
        %v859 = vld [vmem:[%s379 + $0x98] sm:$0xf]
        %v860 = vld [vmem:[%s379 + $0x9c] sm:$0xf]
        %v861 = vld [vmem:[%s379 + $0xa0] sm:$0xf]
        %v862 = vld [vmem:[%s379 + $0xa4] sm:$0xf]
        %v863 = vld [vmem:[%s379 + $0xa8] sm:$0xf]
        %v864 = vld [vmem:[%s379 + $0xac] sm:$0xf]
        %v865 = vld [vmem:[%s379 + $0xb0] sm:$0xf]
        %v866 = vld [vmem:[%s379 + $0xb4] sm:$0xf]
        %v867 = vld [vmem:[%s379 + $0xb8] sm:$0xf]
        %v868 = vld [vmem:[%s379 + $0xbc] sm:$0xf]
        %v869 = vunpack.c.l.bf16 %v853
        %v870 = vunpack.c.l.bf16 %v854
        %v871 = vunpack.c.l.bf16 %v855
        %v872 = vunpack.c.l.bf16 %v856
        %v873 = vunpack.c.l.bf16 %v857
        %v874 = vunpack.c.l.bf16 %v858
        %v875 = vunpack.c.l.bf16 %v859
        %v876 = vunpack.c.l.bf16 %v860
        %v877 = vunpack.c.l.bf16 %v861
        %v878 = vunpack.c.l.bf16 %v862
        %v879 = vunpack.c.l.bf16 %v863
        %v880 = vunpack.c.l.bf16 %v864
        %v881 = vunpack.c.l.bf16 %v865
        %v882 = vunpack.c.l.bf16 %v866
        %v883 = vunpack.c.l.bf16 %v867
        %v884 = vunpack.c.l.bf16 %v868
        %v885 = vld [vmem:[#allocation6 + $0x2] sm:$0x1]
        %v886 = vld [vmem:[#allocation6 + $0x3] sm:$0x1]
        %v887 = vld [vmem:[%s442 + $0x1] sm:$0x1]
        %v888 = vmul.f32 %v837, 0.5
        %v889 = vmul.f32 %v838, 0.5
        %v890 = vmul.f32 %v839, 0.5
        %v891 = vmul.f32 %v840, 0.5
        %v892 = vmul.f32 %v841, 0.5
        %v893 = vmul.f32 %v842, 0.5
        %v894 = vmul.f32 %v843, 0.5
        %v895 = vmul.f32 %v844, 0.5
        %v896 = vmul.f32 %v845, 0.5
        %v897 = vmul.f32 %v846, 0.5
        %v898 = vmul.f32 %v847, 0.5
        %v899 = vmul.f32 %v848, 0.5
        %v900 = vmul.f32 %v849, 0.5
        %v901 = vmul.f32 %v850, 0.5
        %v902 = vmul.f32 %v851, 0.5
        %v903 = vmul.f32 %v852, 0.5
        %v904 = vmul.f32 %v888, 1.442695
        %v905 = vpow.pop %v904
        %v906 = vmul.f32 %v889, 1.442695
        %v907 = vpow.pop %v906
        %v908 = vmul.f32 %v890, 1.442695
        %v909 = vpow.pop %v908
        %v910 = vmul.f32 %v891, 1.442695
        %v911 = vpow.pop %v910
        %v912 = vmul.f32 %v892, 1.442695
        %v913 = vpow.pop %v912
        %v914 = vmul.f32 %v893, 1.442695
        %v915 = vpow.pop %v914
        %v916 = vmul.f32 %v894, 1.442695
        %v917 = vpow.pop %v916
        %v918 = vmul.f32 %v895, 1.442695
        %v919 = vpow.pop %v918
        %v920 = vmul.f32 %v896, 1.442695
        %v921 = vpow.pop %v920
        %v922 = vmul.f32 %v897, 1.442695
        %v923 = vpow.pop %v922
        %v924 = vmul.f32 %v898, 1.442695
        %v925 = vpow.pop %v924
        %v926 = vmul.f32 %v899, 1.442695
        %v927 = vpow.pop %v926
        %v928 = vmul.f32 %v900, 1.442695
        %v929 = vpow.pop %v928
        %v930 = vmul.f32 %v901, 1.442695
        %v931 = vpow.pop %v930
        %v932 = vmul.f32 %v902, 1.442695
        %v933 = vpow.pop %v932
        %v934 = vmul.f32 %v903, 1.442695
        %v935 = vpow.pop %v934
        %v936 = vmul.f32 %v905, %v869
        %v937 = vmul.f32 %v907, %v870
        %v938 = vmul.f32 %v909, %v871
        %v939 = vmul.f32 %v911, %v872
        %v940 = vmul.f32 %v913, %v873
        %v941 = vmul.f32 %v915, %v874
        %v942 = vmul.f32 %v917, %v875
        %v943 = vmul.f32 %v919, %v876
        %v944 = vmul.f32 %v921, %v877
        %v945 = vmul.f32 %v923, %v878
        %v946 = vmul.f32 %v925, %v879
        %v947 = vmul.f32 %v927, %v880
        %v948 = vmul.f32 %v929, %v881
        %v949 = vmul.f32 %v931, %v882
        %v950 = vmul.f32 %v933, %v883
        %v951 = vmul.f32 %v935, %v884
        %v952 = vadd.f32 %v821, %v936
        %v953 = vadd.f32 %v822, %v937
        %v954 = vadd.f32 %v823, %v938
        %v955 = vadd.f32 %v824, %v939
        %v956 = vadd.f32 %v825, %v940
        %v957 = vadd.f32 %v826, %v941
        %v958 = vadd.f32 %v827, %v942
        %v959 = vadd.f32 %v828, %v943
        %v960 = vadd.f32 %v829, %v944
        %v961 = vadd.f32 %v830, %v945
        %v962 = vadd.f32 %v831, %v946
        %v963 = vadd.f32 %v832, %v947
        %v964 = vadd.f32 %v833, %v948
        %v965 = vadd.f32 %v834, %v949
        %v966 = vadd.f32 %v835, %v950
        %v967 = vadd.f32 %v836, %v951
        %v968 = vmul.f32 %v886, 0.5
        %v969 = vmul.f32 %v968, 1.442695
        %v970 = vpow.pop %v969
        %v971 = vmul.f32 %v970, %v887
        %v972 = vadd.f32 %v885, %v971
        %v973 = vlaneseq
        %v974 = vshrl.u32 %v973, 7
        %v975 = vsub.s32 0, %v974
        %v976 = vrot.slane %v972, %v975
        %977 = vmatprep.subr.mxu0 0.0
        %978 = vmatpush1.msra.mxu0 %v952
        %979 = vmatprep.subr.mxu0 0.0
        %980 = vmatpush1.msra.mxu0 %v953
        %981 = vmatprep.subr.mxu0 0.0
        %982 = vmatpush1.msra.mxu0 %v954
        %983 = vmatprep.subr.mxu0 0.0
        %984 = vmatpush1.msra.mxu0 %v955
        %985 = vmatprep.subr.mxu0 0.0
        %986 = vmatpush1.msra.mxu0 %v956
        %987 = vmatprep.subr.mxu0 0.0
        %988 = vmatpush1.msra.mxu0 %v957
        %989 = vmatprep.subr.mxu0 0.0
        %990 = vmatpush1.msra.mxu0 %v958
        %991 = vmatprep.subr.mxu0 0.0
        %992 = vmatpush1.msra.mxu0 %v959
        %993 = vmatprep.subr.mxu0 0.0
        %994 = vmatpush1.msra.mxu0 %v960
        %995 = vmatprep.subr.mxu0 0.0
        %996 = vmatpush1.msra.mxu0 %v961
        %997 = vmatprep.subr.mxu0 0.0
        %998 = vmatpush1.msra.mxu0 %v962
        %999 = vmatprep.subr.mxu0 0.0
        %1000 = vmatpush1.msra.mxu0 %v963
        %1001 = vmatprep.subr.mxu0 0.0
        %1002 = vmatpush1.msra.mxu0 %v964
        %1003 = vmatprep.subr.mxu0 0.0
        %1004 = vmatpush1.msra.mxu0 %v965
        %1005 = vmatprep.subr.mxu0 0.0
        %1006 = vmatpush1.msra.mxu0 %v966
        %1007 = vmatprep.subr.mxu0 0.0
        %1008 = vmatpush1.msra.mxu0 %v967
        %1009 = vmatprep.subr.mxu0 0.0
        %1010 = vmatpush1.msra.mxu0 0.0
        %1011 = vmatprep.subr.mxu0 0.0
        %1012 = vmatpush1.msra.mxu0 0.0
        %1013 = vmatprep.subr.mxu0 0.0
        %1014 = vmatpush1.msra.mxu0 0.0
        %1015 = vmatprep.subr.mxu0 0.0
        %1016 = vmatpush1.msra.mxu0 0.0
        %1017 = vmatprep.subr.mxu0 0.0
        %1018 = vmatpush1.msra.mxu0 0.0
        %1019 = vmatprep.subr.mxu0 0.0
        %1020 = vmatpush1.msra.mxu0 0.0
        %1021 = vmatprep.subr.mxu0 0.0
        %1022 = vmatpush1.msra.mxu0 0.0
        %1023 = vmatprep.subr.mxu0 0.0
        %1024 = vmatpush1.msra.mxu0 0.0
        %1025 = vmatprep.subr.mxu0 0.0
        %1026 = vmatpush1.msra.mxu0 0.0
        %1027 = vmatprep.subr.mxu0 0.0
        %1028 = vmatpush1.msra.mxu0 0.0
        %1029 = vmatprep.subr.mxu0 0.0
        %1030 = vmatpush1.msra.mxu0 0.0
        %1031 = vmatprep.subr.mxu0 0.0
        %1032 = vmatpush1.msra.mxu0 0.0
        %1033 = vmatprep.subr.mxu0 0.0
        %1034 = vmatpush1.msra.mxu0 0.0
        %1035 = vmatprep.subr.mxu0 0.0
        %1036 = vmatpush1.msra.mxu0 0.0
        %1037 = vmatprep.subr.mxu0 0.0
        %1038 = vmatpush1.msra.mxu0 0.0
        %1039 = vmatprep.subr.mxu0 0.0
        %1040 = vmatpush1.msra.mxu0 0.0
        %1041 = vmatprep.mubr.f32.mxu0 0.0
        %1042 = vmatmul.mubr.f32.gmra.mrb[0].mxu0 %v820
        %v1043 = vpop.f32.mrb[0].mxu0
        %v1044 = vadd.f32 %v976, %v1043
        %v1045 = vpop.f32.mrb[0].mxu0
        %1046 = vdwg.mxu0
        %v1047 = vmax.f32 %v1044, 0.0
        %v1048 = vld [vmem:[%s442 + $0x2] sm:$0x1]
        %v1049 = vld [vmem:[%s431] sm:$0xff]
        %v1050 = vld [vmem:[%s431 + $0x8] sm:$0xff]
        %v1051 = vld [vmem:[%s431 + $0x10] sm:$0xff]
        %v1052 = vld [vmem:[%s431 + $0x18] sm:$0xff]
        %v1053 = vld [vmem:[%s431 + $0x20] sm:$0xff]
        %v1054 = vld [vmem:[%s431 + $0x28] sm:$0xff]
        %v1055 = vld [vmem:[%s431 + $0x30] sm:$0xff]
        %v1056 = vld [vmem:[%s431 + $0x38] sm:$0xff]
        %v1057 = vld [vmem:[%s431 + $0x40] sm:$0xff]
        %v1058 = vld [vmem:[%s431 + $0x48] sm:$0xff]
        %v1059 = vld [vmem:[%s431 + $0x50] sm:$0xff]
        %v1060 = vld [vmem:[%s431 + $0x58] sm:$0xff]
        %v1061 = vld [vmem:[%s431 + $0x60] sm:$0xff]
        %v1062 = vld [vmem:[%s431 + $0x68] sm:$0xff]
        %v1063 = vld [vmem:[%s431 + $0x70] sm:$0xff]
        %v1064 = vld [vmem:[%s431 + $0x78] sm:$0xff]
        %s1065 = scalar_lea.vmem %s431, 128
        %v1066 = vld [vmem:[%s1065] sm:$0xff]
        %v1067 = vld [vmem:[%s1065 + $0x8] sm:$0xff]
        %v1068 = vld [vmem:[%s1065 + $0x10] sm:$0xff]
        %v1069 = vld [vmem:[%s1065 + $0x18] sm:$0xff]
        %v1070 = vld [vmem:[%s1065 + $0x20] sm:$0xff]
        %v1071 = vld [vmem:[%s1065 + $0x28] sm:$0xff]
        %v1072 = vld [vmem:[%s1065 + $0x30] sm:$0xff]
        %v1073 = vld [vmem:[%s1065 + $0x38] sm:$0xff]
        %v1074 = vld [vmem:[%s1065 + $0x40] sm:$0xff]
        %v1075 = vld [vmem:[%s1065 + $0x48] sm:$0xff]
        %v1076 = vld [vmem:[%s1065 + $0x50] sm:$0xff]
        %v1077 = vld [vmem:[%s1065 + $0x58] sm:$0xff]
        %v1078 = vld [vmem:[%s1065 + $0x60] sm:$0xff]
        %v1079 = vld [vmem:[%s1065 + $0x68] sm:$0xff]
        %v1080 = vld [vmem:[%s1065 + $0x70] sm:$0xff]
        %v1081 = vld [vmem:[%s1065 + $0x78] sm:$0xff]
        %v1082 = vld [vmem:[%s438] sm:$0xf]
        %v1083 = vld [vmem:[%s438 + $0x4] sm:$0xf]
        %v1084 = vld [vmem:[%s438 + $0x8] sm:$0xf]
        %v1085 = vld [vmem:[%s438 + $0xc] sm:$0xf]
        %v1086 = vld [vmem:[%s438 + $0x10] sm:$0xf]
        %v1087 = vld [vmem:[%s438 + $0x14] sm:$0xf]
        %v1088 = vld [vmem:[%s438 + $0x18] sm:$0xf]
        %v1089 = vld [vmem:[%s438 + $0x1c] sm:$0xf]
        %v1090 = vld [vmem:[%s438 + $0x20] sm:$0xf]
        %v1091 = vld [vmem:[%s438 + $0x24] sm:$0xf]
        %v1092 = vld [vmem:[%s438 + $0x28] sm:$0xf]
        %v1093 = vld [vmem:[%s438 + $0x2c] sm:$0xf]
        %v1094 = vld [vmem:[%s438 + $0x30] sm:$0xf]
        %v1095 = vld [vmem:[%s438 + $0x34] sm:$0xf]
        %v1096 = vld [vmem:[%s438 + $0x38] sm:$0xf]
        %v1097 = vld [vmem:[%s438 + $0x3c] sm:$0xf]
        %v1098 = vunpack.c.l.bf16 %v1082
        %v1099 = vunpack.c.l.bf16 %v1083
        %v1100 = vunpack.c.l.bf16 %v1084
        %v1101 = vunpack.c.l.bf16 %v1085
        %v1102 = vunpack.c.l.bf16 %v1086
        %v1103 = vunpack.c.l.bf16 %v1087
        %v1104 = vunpack.c.l.bf16 %v1088
        %v1105 = vunpack.c.l.bf16 %v1089
        %v1106 = vunpack.c.l.bf16 %v1090
        %v1107 = vunpack.c.l.bf16 %v1091
        %v1108 = vunpack.c.l.bf16 %v1092
        %v1109 = vunpack.c.l.bf16 %v1093
        %v1110 = vunpack.c.l.bf16 %v1094
        %v1111 = vunpack.c.l.bf16 %v1095
        %v1112 = vunpack.c.l.bf16 %v1096
        %v1113 = vunpack.c.l.bf16 %v1097
        %v1114 = vld [vmem:[#allocation8] sm:$0x1]
        %s1115 = scalar_lea.vmem [#allocation8], 1
        %v1116 = vld [vmem:[%s1115] sm:$0x1]
        %v1117 = vmul.f32 %v1066, 0.5
        %v1118 = vmul.f32 %v1067, 0.5
        %v1119 = vmul.f32 %v1068, 0.5
        %v1120 = vmul.f32 %v1069, 0.5
        %v1121 = vmul.f32 %v1070, 0.5
        %v1122 = vmul.f32 %v1071, 0.5
        %v1123 = vmul.f32 %v1072, 0.5
        %v1124 = vmul.f32 %v1073, 0.5
        %v1125 = vmul.f32 %v1074, 0.5
        %v1126 = vmul.f32 %v1075, 0.5
        %v1127 = vmul.f32 %v1076, 0.5
        %v1128 = vmul.f32 %v1077, 0.5
        %v1129 = vmul.f32 %v1078, 0.5
        %v1130 = vmul.f32 %v1079, 0.5
        %v1131 = vmul.f32 %v1080, 0.5
        %v1132 = vmul.f32 %v1081, 0.5
        %v1133 = vmul.f32 %v1117, 1.442695
        %v1134 = vpow.pop %v1133
        %v1135 = vmul.f32 %v1118, 1.442695
        %v1136 = vpow.pop %v1135
        %v1137 = vmul.f32 %v1119, 1.442695
        %v1138 = vpow.pop %v1137
        %v1139 = vmul.f32 %v1120, 1.442695
        %v1140 = vpow.pop %v1139
        %v1141 = vmul.f32 %v1121, 1.442695
        %v1142 = vpow.pop %v1141
        %v1143 = vmul.f32 %v1122, 1.442695
        %v1144 = vpow.pop %v1143
        %v1145 = vmul.f32 %v1123, 1.442695
        %v1146 = vpow.pop %v1145
        %v1147 = vmul.f32 %v1124, 1.442695
        %v1148 = vpow.pop %v1147
        %v1149 = vmul.f32 %v1125, 1.442695
        %v1150 = vpow.pop %v1149
        %v1151 = vmul.f32 %v1126, 1.442695
        %v1152 = vpow.pop %v1151
        %v1153 = vmul.f32 %v1127, 1.442695
        %v1154 = vpow.pop %v1153
        %v1155 = vmul.f32 %v1128, 1.442695
        %v1156 = vpow.pop %v1155
        %v1157 = vmul.f32 %v1129, 1.442695
        %v1158 = vpow.pop %v1157
        %v1159 = vmul.f32 %v1130, 1.442695
        %v1160 = vpow.pop %v1159
        %v1161 = vmul.f32 %v1131, 1.442695
        %v1162 = vpow.pop %v1161
        %v1163 = vmul.f32 %v1132, 1.442695
        %v1164 = vpow.pop %v1163
        %v1165 = vmul.f32 %v1134, %v1098
        %v1166 = vmul.f32 %v1136, %v1099
        %v1167 = vmul.f32 %v1138, %v1100
        %v1168 = vmul.f32 %v1140, %v1101
        %v1169 = vmul.f32 %v1142, %v1102
        %v1170 = vmul.f32 %v1144, %v1103
        %v1171 = vmul.f32 %v1146, %v1104
        %v1172 = vmul.f32 %v1148, %v1105
        %v1173 = vmul.f32 %v1150, %v1106
        %v1174 = vmul.f32 %v1152, %v1107
        %v1175 = vmul.f32 %v1154, %v1108
        %v1176 = vmul.f32 %v1156, %v1109
        %v1177 = vmul.f32 %v1158, %v1110
        %v1178 = vmul.f32 %v1160, %v1111
        %v1179 = vmul.f32 %v1162, %v1112
        %v1180 = vmul.f32 %v1164, %v1113
        %v1181 = vadd.f32 %v1049, %v1165
        %v1182 = vadd.f32 %v1050, %v1166
        %v1183 = vadd.f32 %v1051, %v1167
        %v1184 = vadd.f32 %v1052, %v1168
        %v1185 = vadd.f32 %v1053, %v1169
        %v1186 = vadd.f32 %v1054, %v1170
        %v1187 = vadd.f32 %v1055, %v1171
        %v1188 = vadd.f32 %v1056, %v1172
        %v1189 = vadd.f32 %v1057, %v1173
        %v1190 = vadd.f32 %v1058, %v1174
        %v1191 = vadd.f32 %v1059, %v1175
        %v1192 = vadd.f32 %v1060, %v1176
        %v1193 = vadd.f32 %v1061, %v1177
        %v1194 = vadd.f32 %v1062, %v1178
        %v1195 = vadd.f32 %v1063, %v1179
        %v1196 = vadd.f32 %v1064, %v1180
        %v1197 = vmul.f32 %v1116, 0.5
        %v1198 = vmul.f32 %v1197, 1.442695
        %v1199 = vpow.pop %v1198
        %v1200 = vmul.f32 %v1199, %v1048
        %v1201 = vadd.f32 %v1114, %v1200
        %v1203 = vlaneseq
        %v1204 = vshrl.u32 %v1203, 7
        %v1205 = vsub.s32 0, %v1204
        %v1206 = vrot.slane %v1201, %v1205
        %1208 = vmatprep.subr.mxu0 0.0
        %1209 = vmatpush1.msra.mxu0 %v1181
        %1210 = vmatprep.subr.mxu0 0.0
        %1211 = vmatpush1.msra.mxu0 %v1182
        %1212 = vmatprep.subr.mxu0 0.0
        %1213 = vmatpush1.msra.mxu0 %v1183
        %1214 = vmatprep.subr.mxu0 0.0
        %1215 = vmatpush1.msra.mxu0 %v1184
        %1216 = vmatprep.subr.mxu0 0.0
        %1217 = vmatpush1.msra.mxu0 %v1185
        %1218 = vmatprep.subr.mxu0 0.0
        %1219 = vmatpush1.msra.mxu0 %v1186
        %1220 = vmatprep.subr.mxu0 0.0
        %1221 = vmatpush1.msra.mxu0 %v1187
        %1222 = vmatprep.subr.mxu0 0.0
        %1223 = vmatpush1.msra.mxu0 %v1188
        %1224 = vmatprep.subr.mxu0 0.0
        %1225 = vmatpush1.msra.mxu0 %v1189
        %1226 = vmatprep.subr.mxu0 0.0
        %1227 = vmatpush1.msra.mxu0 %v1190
        %1228 = vmatprep.subr.mxu0 0.0
        %1229 = vmatpush1.msra.mxu0 %v1191
        %1230 = vmatprep.subr.mxu0 0.0
        %1231 = vmatpush1.msra.mxu0 %v1192
        %1232 = vmatprep.subr.mxu0 0.0
        %1233 = vmatpush1.msra.mxu0 %v1193
        %1234 = vmatprep.subr.mxu0 0.0
        %1235 = vmatpush1.msra.mxu0 %v1194
        %1236 = vmatprep.subr.mxu0 0.0
        %1237 = vmatpush1.msra.mxu0 %v1195
        %1238 = vmatprep.subr.mxu0 0.0
        %1239 = vmatpush1.msra.mxu0 %v1196
        %1240 = vmatprep.subr.mxu0 0.0
        %1241 = vmatpush1.msra.mxu0 0.0
        %1242 = vmatprep.subr.mxu0 0.0
        %1243 = vmatpush1.msra.mxu0 0.0
        %1244 = vmatprep.subr.mxu0 0.0
        %1245 = vmatpush1.msra.mxu0 0.0
        %1246 = vmatprep.subr.mxu0 0.0
        %1247 = vmatpush1.msra.mxu0 0.0
        %1248 = vmatprep.subr.mxu0 0.0
        %1249 = vmatpush1.msra.mxu0 0.0
        %1250 = vmatprep.subr.mxu0 0.0
        %1251 = vmatpush1.msra.mxu0 0.0
        %1252 = vmatprep.subr.mxu0 0.0
        %1253 = vmatpush1.msra.mxu0 0.0
        %1254 = vmatprep.subr.mxu0 0.0
        %1255 = vmatpush1.msra.mxu0 0.0
        %1256 = vmatprep.subr.mxu0 0.0
        %1257 = vmatpush1.msra.mxu0 0.0
        %1258 = vmatprep.subr.mxu0 0.0
        %1259 = vmatpush1.msra.mxu0 0.0
        %1260 = vmatprep.subr.mxu0 0.0
        %1261 = vmatpush1.msra.mxu0 0.0
        %1262 = vmatprep.subr.mxu0 0.0
        %1263 = vmatpush1.msra.mxu0 0.0
        %1264 = vmatprep.subr.mxu0 0.0
        %1265 = vmatpush1.msra.mxu0 0.0
        %1266 = vmatprep.subr.mxu0 0.0
        %1267 = vmatpush1.msra.mxu0 0.0
        %1268 = vmatprep.subr.mxu0 0.0
        %1269 = vmatpush1.msra.mxu0 0.0
        %1270 = vmatprep.subr.mxu0 0.0
        %1271 = vmatpush1.msra.mxu0 0.0
        %1272 = vmatprep.mubr.f32.mxu0 0.0
        %1273 = vmatmul.mubr.f32.gmra.mrb[0].mxu0 %v1047
        %v1274 = vpop.f32.mrb[0].mxu0
        %v1275 = vadd.f32 %v1206, %v1274
        %v1276 = vpop.f32.mrb[0].mxu0
        %1277 = vdwg.mxu0
        %vm1278 = vcmask 15360
        %1279 = vst.msk [vmem:[%s446] sm:$0xff] %vm1278, %v1275
        %p1280 = scmp.lt.s32.totalorder %s31, 3
        %s1281 = scalar_select %p1280, %s31, 3
        %s1282 = smul.addr %s1281, 8
        %s1283 = scalar_lea.vmem %s9, %s1282
        // Predicated region
        $region69: #{tpu_custom_call.1} parent=51 // pred_check
          %p1284 = pneg %p246
        $region70: #{tpu_custom_call.1} parent=51 // pred_check_branch
          %1286 = sbr.rel (%p1284) target = $region72
        $region71: #{tpu_custom_call.1} parent=51 // pred_region
          _
        $region72: #{tpu_custom_call.1} parent=51 // pred_fallthru
          _
      $region52: #{tpu_custom_call.1} parent=5 // pred_fallthru
        _
      %p1287 = scmp.le.s32.totalorder 2, %s26
      // Predicated region
      $region73: #{tpu_custom_call.1} parent=5 // pred_check
        %p1288 = pneg %p1287
      $region74: #{tpu_custom_call.1} parent=5 // pred_check_branch
        %1290 = sbr.rel (%p1288) target = $region76
      $region75: #{tpu_custom_call.1} parent=5 // pred_region
        %s1291 = ssub.s32 %s26, 2
        // Predicated region
        $region77: #{tpu_custom_call.1} parent=75 // pred_check
          %p1292 = pneg %p252
        $region78: #{tpu_custom_call.1} parent=75 // pred_check_branch
          %1294 = sbr.rel (%p1292) target = $region80
        $region79: #{tpu_custom_call.1} parent=75 // pred_region
          %p1295 = scmp.lt.s32.totalorder %s32, 3
          %s1296 = scalar_select %p1295, %s32, 3
          %s1297 = smul.addr %s1296, 8
          %s1298 = scalar_lea.vmem %s9, %s1297
        $region80: #{tpu_custom_call.1} parent=75 // pred_fallthru
          _
      $region76: #{tpu_custom_call.1} parent=5 // pred_fallthru
        _
    $region6: #{tpu_custom_call.1} parent=1 // loop_footer
      %s30 = sadd.s32 1, %s26
    $region7: #{tpu_custom_call.1} parent=1 // loop_footer_branch
      %25 = sbr.rel target = $region3
    $region8: #{tpu_custom_call.1} parent=1 // loop_exit
      _
    %1299 = vsyncpa [#allocation5], 1
    %s1300 = scalar_lea.sflag [#allocation5], 1
    %1301 = vsyncpa %s1300, 1
    %1302 = vsyncpa [#allocation7], 1
    %1303 = vsyncpa [#allocation10], 1
    %s1304 = scalar_lea.sflag [#allocation10], 1
    %1305 = vsyncpa %s1304, 1

</llo_original>
